<compile_context>
chip_gen: v7x
topology: tpu7x:2x2x1
jax: 0.10.0
libtpu: 0.0.40
codegen_flags: <defaults>
</compile_context>

<pallas_src>
import functools
import math

import jax
import jax.numpy as jnp
from jax.experimental import pallas as pl
from jax.experimental.pallas import tpu as pltpu

LN_EPS = 1e-5  # nn.LayerNorm default


# ----------------------------- in-kernel math helpers -----------------------------

def _erf_approx(x):
    # Abramowitz & Stegun 7.1.26, |error| < 1.5e-7 (float32-level accuracy).
    # TODO(synk): nn.GELU() uses exact erf; Mosaic erf lowering availability varies
    # across versions, so we use a float32-accurate polynomial in-kernel instead.
    a1, a2, a3, a4, a5 = 0.254829592, -0.284496736, 1.421413741, -1.453152027, 1.061405429
    p = 0.3275911
    sgn = jnp.where(x >= 0.0, 1.0, -1.0)
    ax = jnp.abs(x)
    t = 1.0 / (1.0 + p * ax)
    poly = ((((a5 * t + a4) * t + a3) * t + a2) * t + a1) * t
    return sgn * (1.0 - poly * jnp.exp(-ax * ax))


def _gelu_exact(x):
    # Exact (erf-based) GELU, matching torch.nn.GELU() default.
    return 0.5 * x * (1.0 + _erf_approx(x * (1.0 / math.sqrt(2.0))))


def _layernorm(x, w, b):
    mean = jnp.mean(x, axis=-1, keepdims=True)
    var = jnp.mean(jnp.square(x - mean), axis=-1, keepdims=True)
    return (x - mean) * jax.lax.rsqrt(var + LN_EPS) * w + b


# ----------------------------------- kernel ---------------------------------------

def attention_block_kernel(
    data_ref, temb_ref, hmask_ref,
    ln1w_ref, ln1b_ref,
    wq_ref, wk_ref, wv_ref, bq_ref, bk_ref, bv_ref,
    wo_ref, bo_ref,
    ln2w_ref, ln2b_ref,
    w1_ref, b1_ref, w2_ref, b2_ref,
    out_ref, attnw_ref=None,
    *, num_heads,
):
    Bt, S, E = data_ref.shape
    mdt = wq_ref.dtype  # MXU input dtype (bf16 by default); accumulation stays f32

    # ---- embed + norm_1 on the flattened (Bt*S, E) slab (elementwise in f32) ----
    x = data_ref[...].astype(jnp.float32)        # (Bt, S, E)
    temb = temb_ref[...].astype(jnp.float32)     # (Bt, 1, E)  -> broadcast over S
    emb = (x + temb).reshape(Bt * S, E)          # data + t_embed.unsqueeze(1)
    norm1 = _layernorm(emb, ln1w_ref[...], ln1b_ref[...])     # (Bt*S, E) f32
    norm1_m = norm1.astype(mdt)

    def proj(a_m, w_ref, b_ref):
        # a_m already in the MXU dtype; bias added in f32 after the f32 accumulation.
        return jnp.dot(a_m, w_ref[...], preferred_element_type=jnp.float32) + b_ref[...]

    # MultiheadAttention in-projection.  Softmax scale is pre-folded into wq/bq.
    q = proj(norm1_m, wq_ref, bq_ref).reshape(Bt, S, E)       # f32
    k = proj(norm1_m, wk_ref, bk_ref).reshape(Bt, S, E)
    v = proj(norm1_m, wv_ref, bv_ref).reshape(Bt, S, E)
    k_m = k.astype(mdt)   # hoisted cast; K is contracted on its last axis (no transpose)
    v_m = v.astype(mdt)

    # Per-head attention via precomputed one-hot column masks (E <= 128 path).
    # num_heads is small and static -> unrolled.
    attn_cat = None
    w_sum = None
    for h in range(num_heads):
        m = hmask_ref[h]                              # (1, E) 0/1 mask for head h
        qm = (q * m).astype(mdt)                      # keep only head-h features
        s = jnp.einsum('bqe,bke->bqk', qm, k_m,
                       preferred_element_type=jnp.float32)    # (Bt, S, S)
        s = s - jnp.max(s, axis=-1, keepdims=True)
        p = jnp.exp(s)
        p = p * pl.reciprocal(jnp.sum(p, axis=-1, keepdims=True), approx=True)
        if attnw_ref is not None:
            w_sum = p if w_sum is None else w_sum + p
        pv = jnp.einsum('bqk,bke->bqe', p.astype(mdt), v_m,
                        preferred_element_type=jnp.float32)   # (Bt, S, E)
        hv = pv * m                                   # head h lands in its own columns
        attn_cat = hv if attn_cat is None else attn_cat + hv

    # attn_weights (average_attn_weights=True default): mean over heads, kept f32.
    if attnw_ref is not None:
        attnw_ref[...] = (w_sum * (1.0 / num_heads)).astype(attnw_ref.dtype)

    # out-projection + residual (residual is from the norm_1 output, per the module)
    attn2d = attn_cat.reshape(Bt * S, E)
    attn_o = proj(attn2d.astype(mdt), wo_ref, bo_ref)
    attn_residual = norm1 + attn_o

    # norm_2 + MLP (Linear -> GELU -> Dropout(0) -> Linear -> Dropout(0)) + residual
    norm2 = _layernorm(attn_residual, ln2w_ref[...], ln2b_ref[...])
    h1 = _gelu_exact(proj(norm2.astype(mdt), w1_ref, b1_ref))
    mlp = proj(h1.astype(mdt), w2_ref, b2_ref)
    out_ref[...] = (attn_residual + mlp).astype(out_ref.dtype)


# --------------------------------- JAX wrapper -------------------------------------

def sinusoidal_embedding(t, dim):
    # Standard diffusion sinusoidal position embedding: [sin(t*f), cos(t*f)].
    half = dim // 2
    freqs = jnp.exp(
        -math.log(10000.0) * jnp.arange(half, dtype=jnp.float32) / (half - 1)
    )
    args = t.astype(jnp.float32)[:, None] * freqs[None, :]
    return jnp.concatenate([jnp.sin(args), jnp.cos(args)], axis=-1)  # (B, dim)


def _pick_block_b(B, S):
    """Largest batch block giving >= 2 grid steps, with 8-aligned flat row blocks."""
    if B == 1:
        return 1
    candidates = [d for d in range(1, B // 2 + 1) if B % d == 0 and (d * S) % 8 == 0]
    if candidates:
        return max(candidates)
    return B  # single full-extent block (always legal)


def attention_block_forward(data, t, params, *, num_heads, block_b=None,
                            return_attn_weights=True, matmul_dtype=jnp.bfloat16):
    B, S, E = data.shape
    H_mlp = params["w1"].shape[1]
    time_dim = params["time_w"].shape[0]
    assert E % num_heads == 0
    head_dim = E // num_heads

    if block_b is None:
        block_b = _pick_block_b(B, S)
    assert B % block_b == 0
    grid_b = B // block_b
    # Flat (B*S, E) output slab: the (8,128) rule needs the row block 8-aligned
    # (or a single full-extent block).
    assert (block_b * S) % 8 == 0 or grid_b == 1

    # time_transform: SinusoidalPositionEmbedding -> Linear(no bias) -> GELU (tiny; glue JAX)
    temb = sinusoidal_embedding(t, time_dim)                        # (B, time_dim)
    temb = jax.nn.gelu(temb @ params["time_w"], approximate=False)  # (B, E)
    temb = temb.reshape(B, 1, E).astype(jnp.float32)

    # Per-head 0/1 column masks, precomputed once: (num_heads, 1, E).
    lane = jnp.arange(E, dtype=jnp.int32) // head_dim
    hmask = (lane[None, :] == jnp.arange(num_heads, dtype=jnp.int32)[:, None])
    hmask = hmask.astype(jnp.float32).reshape(num_heads, 1, E)

    # Weights pre-cast to the MXU input dtype (halves weight VMEM/DMA); softmax scale
    # folded into the Q projection.  Biases / LayerNorm params stay f32.
    scale = 1.0 / math.sqrt(head_dim)
    mdt = matmul_dtype
    wq = (params["wq"] * scale).astype(mdt)
    bq = params["bq"] * scale
    wk = params["wk"].astype(mdt)
    wv = params["wv"].astype(mdt)
    wo = params["wo"].astype(mdt)
    w1 = params["w1"].astype(mdt)
    w2 = params["w2"].astype(mdt)

    def const_spec(shape):
        return pl.BlockSpec(shape, lambda b, _n=len(shape): (0,) * _n)

    in_specs = [
        pl.BlockSpec((block_b, S, E), lambda b: (b, 0, 0)),   # data
        pl.BlockSpec((block_b, 1, E), lambda b: (b, 0, 0)),   # t_embed
        const_spec((num_heads, 1, E)),                        # per-head masks
        const_spec((1, E)), const_spec((1, E)),               # ln1 w, b
        const_spec((E, E)), const_spec((E, E)), const_spec((E, E)),  # Wq, Wk, Wv
        const_spec((1, E)), const_spec((1, E)), const_spec((1, E)),  # bq, bk, bv
        const_spec((E, E)), const_spec((1, E)),               # Wo, bo
        const_spec((1, E)), const_spec((1, E)),               # ln2 w, b
        const_spec((E, H_mlp)), const_spec((1, H_mlp)),       # W1, b1
        const_spec((H_mlp, E)), const_spec((1, E)),           # W2, b2
    ]

    out_flat_spec = pl.BlockSpec((block_b * S, E), lambda b: (b, 0))
    out_flat_shape = jax.ShapeDtypeStruct((B * S, E), data.dtype)
    if return_attn_weights:
        out_specs = (out_flat_spec,
                     pl.BlockSpec((block_b, S, S), lambda b: (b, 0, 0)))
        out_shape = (out_flat_shape,
                     jax.ShapeDtypeStruct((B, S, S), jnp.float32))
    else:
        out_specs = out_flat_spec
        out_shape = out_flat_shape

    kernel = functools.partial(attention_block_kernel, num_heads=num_heads)
    result = pl.pallas_call(
        kernel,
        out_shape=out_shape,
        grid_spec=pltpu.PrefetchScalarGridSpec(
            num_scalar_prefetch=0,
            grid=(grid_b,),
            in_specs=in_specs,
            out_specs=out_specs,
        ),
        compiler_params=pltpu.CompilerParams(
            dimension_semantics=("parallel",),
            vmem_limit_bytes=32 * 1024 * 1024,
        ),
    )(
        data, temb, hmask,
        params["ln1_w"], params["ln1_b"],
        wq, wk, wv, bq, params["bk"], params["bv"],
        wo, params["bo"],
        params["ln2_w"], params["ln2_b"],
        w1, params["b1"], w2, params["b2"],
    )

    if return_attn_weights:
        out_flat, attn_w = result
    else:
        out_flat, attn_w = result, None
    return {"output": out_flat.reshape(B, S, E), "attn_weights": attn_w}


# ------------------------------ deterministic params --------------------------------

def init_params(key, embed_dim, hidden_dim, time_dim):
    ks = jax.random.split(key, 13)
    rnd = lambda k, shape, s=0.05: (s * jax.random.normal(k, shape)).astype(jnp.float32)
    return {
        "ln1_w": jnp.ones((1, embed_dim), jnp.float32),
        "ln1_b": jnp.zeros((1, embed_dim), jnp.float32),
        "ln2_w": jnp.ones((1, embed_dim), jnp.float32),
        "ln2_b": jnp.zeros((1, embed_dim), jnp.float32),
        "wq": rnd(ks[0], (embed_dim, embed_dim)),
        "wk": rnd(ks[1], (embed_dim, embed_dim)),
        "wv": rnd(ks[2], (embed_dim, embed_dim)),
        "bq": rnd(ks[3], (1, embed_dim)),
        "bk": rnd(ks[4], (1, embed_dim)),
        "bv": rnd(ks[5], (1, embed_dim)),
        "wo": rnd(ks[6], (embed_dim, embed_dim)),
        "bo": rnd(ks[7], (1, embed_dim)),
        "w1": rnd(ks[8], (embed_dim, hidden_dim)),
        "b1": rnd(ks[9], (1, hidden_dim)),
        "w2": rnd(ks[10], (hidden_dim, embed_dim)),
        "b2": rnd(ks[11], (1, embed_dim)),
        "time_w": rnd(ks[12], (time_dim, embed_dim)),  # Linear(time_dim, embed_dim, bias=False)
    }


if __name__ == "__main__":
    B, S, E, HID, NUM_HEADS, TIME_DIM = 4, 8, 32, 64, 4, 128

    key = jax.random.PRNGKey(0)
    k_data, k_t, k_params = jax.random.split(key, 3)

    data = jax.random.normal(k_data, (B, S, E), jnp.float32)         # (batch, seq, embed)
    t = jax.random.randint(k_t, (B,), 0, 1000).astype(jnp.float32)   # diffusion timestep per batch
    params = init_params(k_params, E, HID, TIME_DIM)

    result = attention_block_forward(data, t, params, num_heads=NUM_HEADS)
    jax.block_until_ready(result)

    assert result["output"].shape == (B, S, E)
    assert result["attn_weights"].shape == (B, S, S)
    assert bool(jnp.all(jnp.isfinite(result["output"])))
    assert bool(jnp.all(jnp.isfinite(result["attn_weights"])))
    print("KERNEL_OK")
</pallas_src>

<mosaic_0001>
module attributes {stable_mosaic.version = 11 : i64} {
  func.func @attention_block_kernel(%arg0: i32, %arg1: memref<2x8x32xf32, #tpu.memory_space<vmem>>, %arg2: memref<2x1x32xf32, #tpu.memory_space<vmem>>, %arg3: memref<4x1x32xf32, #tpu.memory_space<vmem>>, %arg4: memref<1x32xf32, #tpu.memory_space<vmem>>, %arg5: memref<1x32xf32, #tpu.memory_space<vmem>>, %arg6: memref<32x32xbf16, #tpu.memory_space<vmem>>, %arg7: memref<32x32xbf16, #tpu.memory_space<vmem>>, %arg8: memref<32x32xbf16, #tpu.memory_space<vmem>>, %arg9: memref<1x32xf32, #tpu.memory_space<vmem>>, %arg10: memref<1x32xf32, #tpu.memory_space<vmem>>, %arg11: memref<1x32xf32, #tpu.memory_space<vmem>>, %arg12: memref<32x32xbf16, #tpu.memory_space<vmem>>, %arg13: memref<1x32xf32, #tpu.memory_space<vmem>>, %arg14: memref<1x32xf32, #tpu.memory_space<vmem>>, %arg15: memref<1x32xf32, #tpu.memory_space<vmem>>, %arg16: memref<32x64xbf16, #tpu.memory_space<vmem>>, %arg17: memref<1x64xf32, #tpu.memory_space<vmem>>, %arg18: memref<64x32xbf16, #tpu.memory_space<vmem>>, %arg19: memref<1x32xf32, #tpu.memory_space<vmem>>, %arg20: memref<16x32xf32, #tpu.memory_space<vmem>>, %arg21: memref<2x8x8xf32, #tpu.memory_space<vmem>>) attributes {dimension_semantics = [#tpu.dimension_semantics<parallel>], iteration_bounds = array<i64: 2>, scalar_prefetch = 0 : i64, scratch_operands = 0 : i64, tpu.core_type = #tpu.core_type<tc>, window_params = [{transform_indices = @transform_0, window_bounds = array<i64: 2, 8, 32>}, {transform_indices = @transform_1, window_bounds = array<i64: 2, 1, 32>}, {pipeline_mode = #tpu.pipeline_mode<synchronous>, transform_indices = @transform_2, window_bounds = array<i64: 4, 1, 32>}, {pipeline_mode = #tpu.pipeline_mode<synchronous>, transform_indices = @transform_3, window_bounds = array<i64: 1, 32>}, {pipeline_mode = #tpu.pipeline_mode<synchronous>, transform_indices = @transform_4, window_bounds = array<i64: 1, 32>}, {pipeline_mode = #tpu.pipeline_mode<synchronous>, transform_indices = @transform_5, window_bounds = array<i64: 32, 32>}, {pipeline_mode = #tpu.pipeline_mode<synchronous>, transform_indices = @transform_6, window_bounds = array<i64: 32, 32>}, {pipeline_mode = #tpu.pipeline_mode<synchronous>, transform_indices = @transform_7, window_bounds = array<i64: 32, 32>}, {pipeline_mode = #tpu.pipeline_mode<synchronous>, transform_indices = @transform_8, window_bounds = array<i64: 1, 32>}, {pipeline_mode = #tpu.pipeline_mode<synchronous>, transform_indices = @transform_9, window_bounds = array<i64: 1, 32>}, {pipeline_mode = #tpu.pipeline_mode<synchronous>, transform_indices = @transform_10, window_bounds = array<i64: 1, 32>}, {pipeline_mode = #tpu.pipeline_mode<synchronous>, transform_indices = @transform_11, window_bounds = array<i64: 32, 32>}, {pipeline_mode = #tpu.pipeline_mode<synchronous>, transform_indices = @transform_12, window_bounds = array<i64: 1, 32>}, {pipeline_mode = #tpu.pipeline_mode<synchronous>, transform_indices = @transform_13, window_bounds = array<i64: 1, 32>}, {pipeline_mode = #tpu.pipeline_mode<synchronous>, transform_indices = @transform_14, window_bounds = array<i64: 1, 32>}, {pipeline_mode = #tpu.pipeline_mode<synchronous>, transform_indices = @transform_15, window_bounds = array<i64: 32, 64>}, {pipeline_mode = #tpu.pipeline_mode<synchronous>, transform_indices = @transform_16, window_bounds = array<i64: 1, 64>}, {pipeline_mode = #tpu.pipeline_mode<synchronous>, transform_indices = @transform_17, window_bounds = array<i64: 64, 32>}, {pipeline_mode = #tpu.pipeline_mode<synchronous>, transform_indices = @transform_18, window_bounds = array<i64: 1, 32>}, {transform_indices = @transform_19, window_bounds = array<i64: 16, 32>}, {transform_indices = @transform_20, window_bounds = array<i64: 2, 8, 8>}]} {
    %c0 = arith.constant 0 : index
    %c0_0 = arith.constant 0 : index
    %c0_1 = arith.constant 0 : index
    %0 = vector.load %arg1[%c0, %c0_0, %c0_1] : memref<2x8x32xf32, #tpu.memory_space<vmem>>, vector<2x8x32xf32>
    %c0_2 = arith.constant 0 : index
    %c0_3 = arith.constant 0 : index
    %c0_4 = arith.constant 0 : index
    %1 = vector.load %arg2[%c0_2, %c0_3, %c0_4] : memref<2x1x32xf32, #tpu.memory_space<vmem>>, vector<2x1x32xf32>
    %2 = vector.broadcast %1 : vector<2x1x32xf32> to vector<2x8x32xf32>
    %3 = arith.addf %0, %2 : vector<2x8x32xf32>
    %4 = vector.shape_cast %3 : vector<2x8x32xf32> to vector<16x32xf32>
    %c0_5 = arith.constant 0 : index
    %c0_6 = arith.constant 0 : index
    %5 = vector.load %arg4[%c0_5, %c0_6] : memref<1x32xf32, #tpu.memory_space<vmem>>, vector<1x32xf32>
    %c0_7 = arith.constant 0 : index
    %c0_8 = arith.constant 0 : index
    %6 = vector.load %arg5[%c0_7, %c0_8] : memref<1x32xf32, #tpu.memory_space<vmem>>, vector<1x32xf32>
    %cst = arith.constant dense<0.000000e+00> : vector<16xf32>
    %7 = vector.multi_reduction <add>, %4, %cst [1] : vector<16x32xf32> to vector<16xf32>
    %8 = vector.shape_cast %7 : vector<16xf32> to vector<16x1xf32>
    %cst_9 = arith.constant 3.200000e+01 : f32
    %9 = vector.broadcast %cst_9 : f32 to vector<16x1xf32>
    %10 = arith.divf %8, %9 : vector<16x1xf32>
    %11 = vector.broadcast %10 : vector<16x1xf32> to vector<16x32xf32>
    %12 = arith.subf %4, %11 : vector<16x32xf32>
    %13 = arith.mulf %12, %12 : vector<16x32xf32>
    %cst_10 = arith.constant dense<0.000000e+00> : vector<16xf32>
    %14 = vector.multi_reduction <add>, %13, %cst_10 [1] : vector<16x32xf32> to vector<16xf32>
    %15 = vector.shape_cast %14 : vector<16xf32> to vector<16x1xf32>
    %cst_11 = arith.constant 3.200000e+01 : f32
    %16 = vector.broadcast %cst_11 : f32 to vector<16x1xf32>
    %17 = arith.divf %15, %16 : vector<16x1xf32>
    %18 = vector.broadcast %10 : vector<16x1xf32> to vector<16x32xf32>
    %19 = arith.subf %4, %18 : vector<16x32xf32>
    %cst_12 = arith.constant 9.99999974E-6 : f32
    %20 = vector.broadcast %cst_12 : f32 to vector<16x1xf32>
    %21 = arith.addf %17, %20 : vector<16x1xf32>
    %22 = math.rsqrt %21 : vector<16x1xf32>
    %23 = vector.broadcast %22 : vector<16x1xf32> to vector<16x32xf32>
    %24 = arith.mulf %19, %23 : vector<16x32xf32>
    %25 = vector.broadcast %5 : vector<1x32xf32> to vector<16x32xf32>
    %26 = arith.mulf %24, %25 : vector<16x32xf32>
    %27 = vector.broadcast %6 : vector<1x32xf32> to vector<16x32xf32>
    %28 = arith.addf %26, %27 : vector<16x32xf32>
    %29 = arith.truncf %28 : vector<16x32xf32> to vector<16x32xbf16>
    %c0_13 = arith.constant 0 : index
    %c0_14 = arith.constant 0 : index
    %30 = vector.load %arg6[%c0_13, %c0_14] : memref<32x32xbf16, #tpu.memory_space<vmem>>, vector<32x32xbf16>
    %cst_15 = arith.constant dense<0.000000e+00> : vector<16x32xf32>
    %31 = tpu.matmul %29, %30, %cst_15 {dimension_numbers = #tpu.dot_dimension_numbers<[1], [0], [0], [1], [0, 0, 1, 1], [], []>} : vector<16x32xbf16>, vector<32x32xbf16>, vector<16x32xf32> -> vector<16x32xf32>
    %c0_16 = arith.constant 0 : index
    %c0_17 = arith.constant 0 : index
    %32 = vector.load %arg9[%c0_16, %c0_17] : memref<1x32xf32, #tpu.memory_space<vmem>>, vector<1x32xf32>
    %33 = vector.broadcast %32 : vector<1x32xf32> to vector<16x32xf32>
    %34 = arith.addf %31, %33 : vector<16x32xf32>
    %35 = vector.shape_cast %34 : vector<16x32xf32> to vector<2x8x32xf32>
    %c0_18 = arith.constant 0 : index
    %c0_19 = arith.constant 0 : index
    %36 = vector.load %arg7[%c0_18, %c0_19] : memref<32x32xbf16, #tpu.memory_space<vmem>>, vector<32x32xbf16>
    %cst_20 = arith.constant dense<0.000000e+00> : vector<16x32xf32>
    %37 = tpu.matmul %29, %36, %cst_20 {dimension_numbers = #tpu.dot_dimension_numbers<[1], [0], [0], [1], [0, 0, 1, 1], [], []>} : vector<16x32xbf16>, vector<32x32xbf16>, vector<16x32xf32> -> vector<16x32xf32>
    %c0_21 = arith.constant 0 : index
    %c0_22 = arith.constant 0 : index
    %38 = vector.load %arg10[%c0_21, %c0_22] : memref<1x32xf32, #tpu.memory_space<vmem>>, vector<1x32xf32>
    %39 = vector.broadcast %38 : vector<1x32xf32> to vector<16x32xf32>
    %40 = arith.addf %37, %39 : vector<16x32xf32>
    %41 = vector.shape_cast %40 : vector<16x32xf32> to vector<2x8x32xf32>
    %c0_23 = arith.constant 0 : index
    %c0_24 = arith.constant 0 : index
    %42 = vector.load %arg8[%c0_23, %c0_24] : memref<32x32xbf16, #tpu.memory_space<vmem>>, vector<32x32xbf16>
    %cst_25 = arith.constant dense<0.000000e+00> : vector<16x32xf32>
    %43 = tpu.matmul %29, %42, %cst_25 {dimension_numbers = #tpu.dot_dimension_numbers<[1], [0], [0], [1], [0, 0, 1, 1], [], []>} : vector<16x32xbf16>, vector<32x32xbf16>, vector<16x32xf32> -> vector<16x32xf32>
    %c0_26 = arith.constant 0 : index
    %c0_27 = arith.constant 0 : index
    %44 = vector.load %arg11[%c0_26, %c0_27] : memref<1x32xf32, #tpu.memory_space<vmem>>, vector<1x32xf32>
    %45 = vector.broadcast %44 : vector<1x32xf32> to vector<16x32xf32>
    %46 = arith.addf %43, %45 : vector<16x32xf32>
    %47 = vector.shape_cast %46 : vector<16x32xf32> to vector<2x8x32xf32>
    %48 = arith.truncf %41 : vector<2x8x32xf32> to vector<2x8x32xbf16>
    %49 = arith.truncf %47 : vector<2x8x32xf32> to vector<2x8x32xbf16>
    %c0_28 = arith.constant 0 : index
    %c0_29 = arith.constant 0 : index
    %c0_30 = arith.constant 0 : index
    %50 = vector.load %arg3[%c0_28, %c0_29, %c0_30] : memref<4x1x32xf32, #tpu.memory_space<vmem>>, vector<1x1x32xf32>
    %51 = vector.shape_cast %50 : vector<1x1x32xf32> to vector<1x32xf32>
    %52 = vector.shape_cast %51 : vector<1x32xf32> to vector<1x1x32xf32>
    %53 = vector.broadcast %52 : vector<1x1x32xf32> to vector<2x8x32xf32>
    %54 = arith.mulf %35, %53 : vector<2x8x32xf32>
    %55 = arith.truncf %54 : vector<2x8x32xf32> to vector<2x8x32xbf16>
    "tpu.trace_start"() <{level = 10 : i32, message = "bqe,bke->bqk"}> : () -> ()
    %cst_31 = arith.constant dense<0.000000e+00> : vector<2x8x8xf32>
    %56 = tpu.matmul %55, %48, %cst_31 {dimension_numbers = #tpu.dot_dimension_numbers<[2], [2], [1], [1], [0, 0, 0, 1, 1, 1], [0], [0]>} : vector<2x8x32xbf16>, vector<2x8x32xbf16>, vector<2x8x8xf32> -> vector<2x8x8xf32>
    "tpu.trace_stop"() : () -> ()
    %cst_32 = arith.constant dense<0xFF800000> : vector<2x8xf32>
    %57 = vector.multi_reduction <maximumf>, %56, %cst_32 [2] : vector<2x8x8xf32> to vector<2x8xf32>
    %58 = vector.shape_cast %57 : vector<2x8xf32> to vector<2x8x1xf32>
    %59 = vector.broadcast %58 : vector<2x8x1xf32> to vector<2x8x8xf32>
    %60 = arith.subf %56, %59 : vector<2x8x8xf32>
    %61 = math.exp %60 : vector<2x8x8xf32>
    %cst_33 = arith.constant dense<0.000000e+00> : vector<2x8xf32>
    %62 = vector.multi_reduction <add>, %61, %cst_33 [2] : vector<2x8x8xf32> to vector<2x8xf32>
    %63 = vector.shape_cast %62 : vector<2x8xf32> to vector<2x8x1xf32>
    %64 = tpu.reciprocal %63 {approx = true} : vector<2x8x1xf32> -> vector<2x8x1xf32>
    %65 = vector.broadcast %64 : vector<2x8x1xf32> to vector<2x8x8xf32>
    %66 = arith.mulf %61, %65 : vector<2x8x8xf32>
    %67 = arith.truncf %66 : vector<2x8x8xf32> to vector<2x8x8xbf16>
    "tpu.trace_start"() <{level = 10 : i32, message = "bqk,bke->bqe"}> : () -> ()
    %cst_34 = arith.constant dense<0.000000e+00> : vector<2x8x32xf32>
    %68 = tpu.matmul %67, %49, %cst_34 {dimension_numbers = #tpu.dot_dimension_numbers<[2], [1], [1], [2], [0, 0, 0, 1, 1, 2], [0], [0]>} : vector<2x8x8xbf16>, vector<2x8x32xbf16>, vector<2x8x32xf32> -> vector<2x8x32xf32>
    "tpu.trace_stop"() : () -> ()
    %69 = vector.shape_cast %51 : vector<1x32xf32> to vector<1x1x32xf32>
    %70 = vector.broadcast %69 : vector<1x1x32xf32> to vector<2x8x32xf32>
    %71 = arith.mulf %68, %70 : vector<2x8x32xf32>
    %c1 = arith.constant 1 : index
    %c0_35 = arith.constant 0 : index
    %c0_36 = arith.constant 0 : index
    %72 = vector.load %arg3[%c1, %c0_35, %c0_36] : memref<4x1x32xf32, #tpu.memory_space<vmem>>, vector<1x1x32xf32>
    %73 = vector.shape_cast %72 : vector<1x1x32xf32> to vector<1x32xf32>
    %74 = vector.shape_cast %73 : vector<1x32xf32> to vector<1x1x32xf32>
    %75 = vector.broadcast %74 : vector<1x1x32xf32> to vector<2x8x32xf32>
    %76 = arith.mulf %35, %75 : vector<2x8x32xf32>
    %77 = arith.truncf %76 : vector<2x8x32xf32> to vector<2x8x32xbf16>
    "tpu.trace_start"() <{level = 10 : i32, message = "bqe,bke->bqk"}> : () -> ()
    %cst_37 = arith.constant dense<0.000000e+00> : vector<2x8x8xf32>
    %78 = tpu.matmul %77, %48, %cst_37 {dimension_numbers = #tpu.dot_dimension_numbers<[2], [2], [1], [1], [0, 0, 0, 1, 1, 1], [0], [0]>} : vector<2x8x32xbf16>, vector<2x8x32xbf16>, vector<2x8x8xf32> -> vector<2x8x8xf32>
    "tpu.trace_stop"() : () -> ()
    %cst_38 = arith.constant dense<0xFF800000> : vector<2x8xf32>
    %79 = vector.multi_reduction <maximumf>, %78, %cst_38 [2] : vector<2x8x8xf32> to vector<2x8xf32>
    %80 = vector.shape_cast %79 : vector<2x8xf32> to vector<2x8x1xf32>
    %81 = vector.broadcast %80 : vector<2x8x1xf32> to vector<2x8x8xf32>
    %82 = arith.subf %78, %81 : vector<2x8x8xf32>
    %83 = math.exp %82 : vector<2x8x8xf32>
    %cst_39 = arith.constant dense<0.000000e+00> : vector<2x8xf32>
    %84 = vector.multi_reduction <add>, %83, %cst_39 [2] : vector<2x8x8xf32> to vector<2x8xf32>
    %85 = vector.shape_cast %84 : vector<2x8xf32> to vector<2x8x1xf32>
    %86 = tpu.reciprocal %85 {approx = true} : vector<2x8x1xf32> -> vector<2x8x1xf32>
    %87 = vector.broadcast %86 : vector<2x8x1xf32> to vector<2x8x8xf32>
    %88 = arith.mulf %83, %87 : vector<2x8x8xf32>
    %89 = arith.addf %66, %88 : vector<2x8x8xf32>
    %90 = arith.truncf %88 : vector<2x8x8xf32> to vector<2x8x8xbf16>
    "tpu.trace_start"() <{level = 10 : i32, message = "bqk,bke->bqe"}> : () -> ()
    %cst_40 = arith.constant dense<0.000000e+00> : vector<2x8x32xf32>
    %91 = tpu.matmul %90, %49, %cst_40 {dimension_numbers = #tpu.dot_dimension_numbers<[2], [1], [1], [2], [0, 0, 0, 1, 1, 2], [0], [0]>} : vector<2x8x8xbf16>, vector<2x8x32xbf16>, vector<2x8x32xf32> -> vector<2x8x32xf32>
    "tpu.trace_stop"() : () -> ()
    %92 = vector.shape_cast %73 : vector<1x32xf32> to vector<1x1x32xf32>
    %93 = vector.broadcast %92 : vector<1x1x32xf32> to vector<2x8x32xf32>
    %94 = arith.mulf %91, %93 : vector<2x8x32xf32>
    %95 = arith.addf %71, %94 : vector<2x8x32xf32>
    %c2 = arith.constant 2 : index
    %c0_41 = arith.constant 0 : index
    %c0_42 = arith.constant 0 : index
    %96 = vector.load %arg3[%c2, %c0_41, %c0_42] : memref<4x1x32xf32, #tpu.memory_space<vmem>>, vector<1x1x32xf32>
    %97 = vector.shape_cast %96 : vector<1x1x32xf32> to vector<1x32xf32>
    %98 = vector.shape_cast %97 : vector<1x32xf32> to vector<1x1x32xf32>
    %99 = vector.broadcast %98 : vector<1x1x32xf32> to vector<2x8x32xf32>
    %100 = arith.mulf %35, %99 : vector<2x8x32xf32>
    %101 = arith.truncf %100 : vector<2x8x32xf32> to vector<2x8x32xbf16>
    "tpu.trace_start"() <{level = 10 : i32, message = "bqe,bke->bqk"}> : () -> ()
    %cst_43 = arith.constant dense<0.000000e+00> : vector<2x8x8xf32>
    %102 = tpu.matmul %101, %48, %cst_43 {dimension_numbers = #tpu.dot_dimension_numbers<[2], [2], [1], [1], [0, 0, 0, 1, 1, 1], [0], [0]>} : vector<2x8x32xbf16>, vector<2x8x32xbf16>, vector<2x8x8xf32> -> vector<2x8x8xf32>
    "tpu.trace_stop"() : () -> ()
    %cst_44 = arith.constant dense<0xFF800000> : vector<2x8xf32>
    %103 = vector.multi_reduction <maximumf>, %102, %cst_44 [2] : vector<2x8x8xf32> to vector<2x8xf32>
    %104 = vector.shape_cast %103 : vector<2x8xf32> to vector<2x8x1xf32>
    %105 = vector.broadcast %104 : vector<2x8x1xf32> to vector<2x8x8xf32>
    %106 = arith.subf %102, %105 : vector<2x8x8xf32>
    %107 = math.exp %106 : vector<2x8x8xf32>
    %cst_45 = arith.constant dense<0.000000e+00> : vector<2x8xf32>
    %108 = vector.multi_reduction <add>, %107, %cst_45 [2] : vector<2x8x8xf32> to vector<2x8xf32>
    %109 = vector.shape_cast %108 : vector<2x8xf32> to vector<2x8x1xf32>
    %110 = tpu.reciprocal %109 {approx = true} : vector<2x8x1xf32> -> vector<2x8x1xf32>
    %111 = vector.broadcast %110 : vector<2x8x1xf32> to vector<2x8x8xf32>
    %112 = arith.mulf %107, %111 : vector<2x8x8xf32>
    %113 = arith.addf %89, %112 : vector<2x8x8xf32>
    %114 = arith.truncf %112 : vector<2x8x8xf32> to vector<2x8x8xbf16>
    "tpu.trace_start"() <{level = 10 : i32, message = "bqk,bke->bqe"}> : () -> ()
    %cst_46 = arith.constant dense<0.000000e+00> : vector<2x8x32xf32>
    %115 = tpu.matmul %114, %49, %cst_46 {dimension_numbers = #tpu.dot_dimension_numbers<[2], [1], [1], [2], [0, 0, 0, 1, 1, 2], [0], [0]>} : vector<2x8x8xbf16>, vector<2x8x32xbf16>, vector<2x8x32xf32> -> vector<2x8x32xf32>
    "tpu.trace_stop"() : () -> ()
    %116 = vector.shape_cast %97 : vector<1x32xf32> to vector<1x1x32xf32>
    %117 = vector.broadcast %116 : vector<1x1x32xf32> to vector<2x8x32xf32>
    %118 = arith.mulf %115, %117 : vector<2x8x32xf32>
    %119 = arith.addf %95, %118 : vector<2x8x32xf32>
    %c3 = arith.constant 3 : index
    %c0_47 = arith.constant 0 : index
    %c0_48 = arith.constant 0 : index
    %120 = vector.load %arg3[%c3, %c0_47, %c0_48] : memref<4x1x32xf32, #tpu.memory_space<vmem>>, vector<1x1x32xf32>
    %121 = vector.shape_cast %120 : vector<1x1x32xf32> to vector<1x32xf32>
    %122 = vector.shape_cast %121 : vector<1x32xf32> to vector<1x1x32xf32>
    %123 = vector.broadcast %122 : vector<1x1x32xf32> to vector<2x8x32xf32>
    %124 = arith.mulf %35, %123 : vector<2x8x32xf32>
    %125 = arith.truncf %124 : vector<2x8x32xf32> to vector<2x8x32xbf16>
    "tpu.trace_start"() <{level = 10 : i32, message = "bqe,bke->bqk"}> : () -> ()
    %cst_49 = arith.constant dense<0.000000e+00> : vector<2x8x8xf32>
    %126 = tpu.matmul %125, %48, %cst_49 {dimension_numbers = #tpu.dot_dimension_numbers<[2], [2], [1], [1], [0, 0, 0, 1, 1, 1], [0], [0]>} : vector<2x8x32xbf16>, vector<2x8x32xbf16>, vector<2x8x8xf32> -> vector<2x8x8xf32>
    "tpu.trace_stop"() : () -> ()
    %cst_50 = arith.constant dense<0xFF800000> : vector<2x8xf32>
    %127 = vector.multi_reduction <maximumf>, %126, %cst_50 [2] : vector<2x8x8xf32> to vector<2x8xf32>
    %128 = vector.shape_cast %127 : vector<2x8xf32> to vector<2x8x1xf32>
    %129 = vector.broadcast %128 : vector<2x8x1xf32> to vector<2x8x8xf32>
    %130 = arith.subf %126, %129 : vector<2x8x8xf32>
    %131 = math.exp %130 : vector<2x8x8xf32>
    %cst_51 = arith.constant dense<0.000000e+00> : vector<2x8xf32>
    %132 = vector.multi_reduction <add>, %131, %cst_51 [2] : vector<2x8x8xf32> to vector<2x8xf32>
    %133 = vector.shape_cast %132 : vector<2x8xf32> to vector<2x8x1xf32>
    %134 = tpu.reciprocal %133 {approx = true} : vector<2x8x1xf32> -> vector<2x8x1xf32>
    %135 = vector.broadcast %134 : vector<2x8x1xf32> to vector<2x8x8xf32>
    %136 = arith.mulf %131, %135 : vector<2x8x8xf32>
    %137 = arith.addf %113, %136 : vector<2x8x8xf32>
    %138 = arith.truncf %136 : vector<2x8x8xf32> to vector<2x8x8xbf16>
    "tpu.trace_start"() <{level = 10 : i32, message = "bqk,bke->bqe"}> : () -> ()
    %cst_52 = arith.constant dense<0.000000e+00> : vector<2x8x32xf32>
    %139 = tpu.matmul %138, %49, %cst_52 {dimension_numbers = #tpu.dot_dimension_numbers<[2], [1], [1], [2], [0, 0, 0, 1, 1, 2], [0], [0]>} : vector<2x8x8xbf16>, vector<2x8x32xbf16>, vector<2x8x32xf32> -> vector<2x8x32xf32>
    "tpu.trace_stop"() : () -> ()
    %140 = vector.shape_cast %121 : vector<1x32xf32> to vector<1x1x32xf32>
    %141 = vector.broadcast %140 : vector<1x1x32xf32> to vector<2x8x32xf32>
    %142 = arith.mulf %139, %141 : vector<2x8x32xf32>
    %143 = arith.addf %119, %142 : vector<2x8x32xf32>
    %cst_53 = arith.constant 2.500000e-01 : f32
    %144 = vector.broadcast %cst_53 : f32 to vector<2x8x8xf32>
    %145 = arith.mulf %137, %144 : vector<2x8x8xf32>
    %c0_54 = arith.constant 0 : index
    %c0_55 = arith.constant 0 : index
    %c0_56 = arith.constant 0 : index
    %146 = vector.load %arg21[%c0_54, %c0_55, %c0_56] : memref<2x8x8xf32, #tpu.memory_space<vmem>>, vector<2x8x8xf32>
    tpu.vector_store %arg21[%c0_54, %c0_55, %c0_56], %145 {strides = array<i32>} : memref<2x8x8xf32, #tpu.memory_space<vmem>>, vector<2x8x8xf32>,
    %147 = vector.shape_cast %143 : vector<2x8x32xf32> to vector<16x32xf32>
    %148 = arith.truncf %147 : vector<16x32xf32> to vector<16x32xbf16>
    %c0_57 = arith.constant 0 : index
    %c0_58 = arith.constant 0 : index
    %149 = vector.load %arg12[%c0_57, %c0_58] : memref<32x32xbf16, #tpu.memory_space<vmem>>, vector<32x32xbf16>
    %cst_59 = arith.constant dense<0.000000e+00> : vector<16x32xf32>
    %150 = tpu.matmul %148, %149, %cst_59 {dimension_numbers = #tpu.dot_dimension_numbers<[1], [0], [0], [1], [0, 0, 1, 1], [], []>} : vector<16x32xbf16>, vector<32x32xbf16>, vector<16x32xf32> -> vector<16x32xf32>
    %c0_60 = arith.constant 0 : index
    %c0_61 = arith.constant 0 : index
    %151 = vector.load %arg13[%c0_60, %c0_61] : memref<1x32xf32, #tpu.memory_space<vmem>>, vector<1x32xf32>
    %152 = vector.broadcast %151 : vector<1x32xf32> to vector<16x32xf32>
    %153 = arith.addf %150, %152 : vector<16x32xf32>
    %154 = arith.addf %28, %153 : vector<16x32xf32>
    %c0_62 = arith.constant 0 : index
    %c0_63 = arith.constant 0 : index
    %155 = vector.load %arg14[%c0_62, %c0_63] : memref<1x32xf32, #tpu.memory_space<vmem>>, vector<1x32xf32>
    %c0_64 = arith.constant 0 : index
    %c0_65 = arith.constant 0 : index
    %156 = vector.load %arg15[%c0_64, %c0_65] : memref<1x32xf32, #tpu.memory_space<vmem>>, vector<1x32xf32>
    %cst_66 = arith.constant dense<0.000000e+00> : vector<16xf32>
    %157 = vector.multi_reduction <add>, %154, %cst_66 [1] : vector<16x32xf32> to vector<16xf32>
    %158 = vector.shape_cast %157 : vector<16xf32> to vector<16x1xf32>
    %cst_67 = arith.constant 3.200000e+01 : f32
    %159 = vector.broadcast %cst_67 : f32 to vector<16x1xf32>
    %160 = arith.divf %158, %159 : vector<16x1xf32>
    %161 = vector.broadcast %160 : vector<16x1xf32> to vector<16x32xf32>
    %162 = arith.subf %154, %161 : vector<16x32xf32>
    %163 = arith.mulf %162, %162 : vector<16x32xf32>
    %cst_68 = arith.constant dense<0.000000e+00> : vector<16xf32>
    %164 = vector.multi_reduction <add>, %163, %cst_68 [1] : vector<16x32xf32> to vector<16xf32>
    %165 = vector.shape_cast %164 : vector<16xf32> to vector<16x1xf32>
    %cst_69 = arith.constant 3.200000e+01 : f32
    %166 = vector.broadcast %cst_69 : f32 to vector<16x1xf32>
    %167 = arith.divf %165, %166 : vector<16x1xf32>
    %168 = vector.broadcast %160 : vector<16x1xf32> to vector<16x32xf32>
    %169 = arith.subf %154, %168 : vector<16x32xf32>
    %cst_70 = arith.constant 9.99999974E-6 : f32
    %170 = vector.broadcast %cst_70 : f32 to vector<16x1xf32>
    %171 = arith.addf %167, %170 : vector<16x1xf32>
    %172 = math.rsqrt %171 : vector<16x1xf32>
    %173 = vector.broadcast %172 : vector<16x1xf32> to vector<16x32xf32>
    %174 = arith.mulf %169, %173 : vector<16x32xf32>
    %175 = vector.broadcast %155 : vector<1x32xf32> to vector<16x32xf32>
    %176 = arith.mulf %174, %175 : vector<16x32xf32>
    %177 = vector.broadcast %156 : vector<1x32xf32> to vector<16x32xf32>
    %178 = arith.addf %176, %177 : vector<16x32xf32>
    %179 = arith.truncf %178 : vector<16x32xf32> to vector<16x32xbf16>
    %c0_71 = arith.constant 0 : index
    %c0_72 = arith.constant 0 : index
    %180 = vector.load %arg16[%c0_71, %c0_72] : memref<32x64xbf16, #tpu.memory_space<vmem>>, vector<32x64xbf16>
    %cst_73 = arith.constant dense<0.000000e+00> : vector<16x64xf32>
    %181 = tpu.matmul %179, %180, %cst_73 {dimension_numbers = #tpu.dot_dimension_numbers<[1], [0], [0], [1], [0, 0, 1, 1], [], []>} : vector<16x32xbf16>, vector<32x64xbf16>, vector<16x64xf32> -> vector<16x64xf32>
    %c0_74 = arith.constant 0 : index
    %c0_75 = arith.constant 0 : index
    %182 = vector.load %arg17[%c0_74, %c0_75] : memref<1x64xf32, #tpu.memory_space<vmem>>, vector<1x64xf32>
    %183 = vector.broadcast %182 : vector<1x64xf32> to vector<16x64xf32>
    %184 = arith.addf %181, %183 : vector<16x64xf32>
    %cst_76 = arith.constant 5.000000e-01 : f32
    %185 = vector.broadcast %cst_76 : f32 to vector<16x64xf32>
    %186 = arith.mulf %185, %184 : vector<16x64xf32>
    %cst_77 = arith.constant 0.707106769 : f32
    %187 = vector.broadcast %cst_77 : f32 to vector<16x64xf32>
    %188 = arith.mulf %184, %187 : vector<16x64xf32>
    %cst_78 = arith.constant 0.000000e+00 : f32
    %189 = vector.broadcast %cst_78 : f32 to vector<16x64xf32>
    %190 = arith.cmpf oge, %188, %189 : vector<16x64xf32>
    %cst_79 = arith.constant 1.000000e+00 : f32
    %cst_80 = arith.constant -1.000000e+00 : f32
    %191 = vector.broadcast %cst_79 : f32 to vector<16x64xf32>
    %192 = vector.broadcast %cst_80 : f32 to vector<16x64xf32>
    %193 = arith.select %190, %191, %192 : vector<16x64xi1>, vector<16x64xf32>
    %194 = math.absf %188 : vector<16x64xf32>
    %cst_81 = arith.constant 0.327591091 : f32
    %195 = vector.broadcast %cst_81 : f32 to vector<16x64xf32>
    %196 = arith.mulf %195, %194 : vector<16x64xf32>
    %cst_82 = arith.constant 1.000000e+00 : f32
    %197 = vector.broadcast %cst_82 : f32 to vector<16x64xf32>
    %198 = arith.addf %197, %196 : vector<16x64xf32>
    %cst_83 = arith.constant 1.000000e+00 : f32
    %199 = vector.broadcast %cst_83 : f32 to vector<16x64xf32>
    %200 = arith.divf %199, %198 : vector<16x64xf32>
    %cst_84 = arith.constant 1.06140542 : f32
    %201 = vector.broadcast %cst_84 : f32 to vector<16x64xf32>
    %202 = arith.mulf %201, %200 : vector<16x64xf32>
    %cst_85 = arith.constant -1.45315206 : f32
    %203 = vector.broadcast %cst_85 : f32 to vector<16x64xf32>
    %204 = arith.addf %202, %203 : vector<16x64xf32>
    %205 = arith.mulf %204, %200 : vector<16x64xf32>
    %cst_86 = arith.constant 1.42141378 : f32
    %206 = vector.broadcast %cst_86 : f32 to vector<16x64xf32>
    %207 = arith.addf %205, %206 : vector<16x64xf32>
    %208 = arith.mulf %207, %200 : vector<16x64xf32>
    %cst_87 = arith.constant -0.284496725 : f32
    %209 = vector.broadcast %cst_87 : f32 to vector<16x64xf32>
    %210 = arith.addf %208, %209 : vector<16x64xf32>
    %211 = arith.mulf %210, %200 : vector<16x64xf32>
    %cst_88 = arith.constant 0.254829586 : f32
    %212 = vector.broadcast %cst_88 : f32 to vector<16x64xf32>
    %213 = arith.addf %211, %212 : vector<16x64xf32>
    %214 = arith.mulf %213, %200 : vector<16x64xf32>
    %cst_89 = arith.constant 0.000000e+00 : f32
    %215 = vector.broadcast %cst_89 : f32 to vector<16x64xf32>
    %216 = arith.subf %215, %194 : vector<16x64xf32>
    %217 = arith.mulf %216, %194 : vector<16x64xf32>
    %218 = math.exp %217 : vector<16x64xf32>
    %219 = arith.mulf %214, %218 : vector<16x64xf32>
    %cst_90 = arith.constant 1.000000e+00 : f32
    %220 = vector.broadcast %cst_90 : f32 to vector<16x64xf32>
    %221 = arith.subf %220, %219 : vector<16x64xf32>
    %222 = arith.mulf %193, %221 : vector<16x64xf32>
    %cst_91 = arith.constant 1.000000e+00 : f32
    %223 = vector.broadcast %cst_91 : f32 to vector<16x64xf32>
    %224 = arith.addf %223, %222 : vector<16x64xf32>
    %225 = arith.mulf %186, %224 : vector<16x64xf32>
    %226 = arith.truncf %225 : vector<16x64xf32> to vector<16x64xbf16>
    %c0_92 = arith.constant 0 : index
    %c0_93 = arith.constant 0 : index
    %227 = vector.load %arg18[%c0_92, %c0_93] : memref<64x32xbf16, #tpu.memory_space<vmem>>, vector<64x32xbf16>
    %cst_94 = arith.constant dense<0.000000e+00> : vector<16x32xf32>
    %228 = tpu.matmul %226, %227, %cst_94 {dimension_numbers = #tpu.dot_dimension_numbers<[1], [0], [0], [1], [0, 0, 1, 1], [], []>} : vector<16x64xbf16>, vector<64x32xbf16>, vector<16x32xf32> -> vector<16x32xf32>
    %c0_95 = arith.constant 0 : index
    %c0_96 = arith.constant 0 : index
    %229 = vector.load %arg19[%c0_95, %c0_96] : memref<1x32xf32, #tpu.memory_space<vmem>>, vector<1x32xf32>
    %230 = vector.broadcast %229 : vector<1x32xf32> to vector<16x32xf32>
    %231 = arith.addf %228, %230 : vector<16x32xf32>
    %232 = arith.addf %154, %231 : vector<16x32xf32>
    %c0_97 = arith.constant 0 : index
    %c0_98 = arith.constant 0 : index
    %233 = vector.load %arg20[%c0_97, %c0_98] : memref<16x32xf32, #tpu.memory_space<vmem>>, vector<16x32xf32>
    tpu.vector_store %arg20[%c0_97, %c0_98], %232 {strides = array<i32>} : memref<16x32xf32, #tpu.memory_space<vmem>>, vector<16x32xf32>,
    return
  }
  func.func @transform_0(%arg0: i32) -> (i32, i32, i32) {
    %c0_i32 = arith.constant 0 : i32
    %c0_i32_0 = arith.constant 0 : i32
    %c0_i32_1 = arith.constant 0 : i32
    return %arg0, %c0_i32, %c0_i32_0 : i32, i32, i32
  }
  func.func @transform_1(%arg0: i32) -> (i32, i32, i32) {
    %c0_i32 = arith.constant 0 : i32
    %c0_i32_0 = arith.constant 0 : i32
    %c0_i32_1 = arith.constant 0 : i32
    return %arg0, %c0_i32, %c0_i32_0 : i32, i32, i32
  }
  func.func @transform_2(%arg0: i32) -> (i32, i32, i32) {
    %c0_i32 = arith.constant 0 : i32
    %c0_i32_0 = arith.constant 0 : i32
    %c0_i32_1 = arith.constant 0 : i32
    %c0_i32_2 = arith.constant 0 : i32
    return %c0_i32, %c0_i32_0, %c0_i32_1 : i32, i32, i32
  }
  func.func @transform_3(%arg0: i32) -> (i32, i32) {
    %c0_i32 = arith.constant 0 : i32
    %c0_i32_0 = arith.constant 0 : i32
    %c0_i32_1 = arith.constant 0 : i32
    return %c0_i32, %c0_i32_0 : i32, i32
  }
  func.func @transform_4(%arg0: i32) -> (i32, i32) {
    %c0_i32 = arith.constant 0 : i32
    %c0_i32_0 = arith.constant 0 : i32
    %c0_i32_1 = arith.constant 0 : i32
    return %c0_i32, %c0_i32_0 : i32, i32
  }
  func.func @transform_5(%arg0: i32) -> (i32, i32) {
    %c0_i32 = arith.constant 0 : i32
    %c0_i32_0 = arith.constant 0 : i32
    %c0_i32_1 = arith.constant 0 : i32
    return %c0_i32, %c0_i32_0 : i32, i32
  }
  func.func @transform_6(%arg0: i32) -> (i32, i32) {
    %c0_i32 = arith.constant 0 : i32
    %c0_i32_0 = arith.constant 0 : i32
    %c0_i32_1 = arith.constant 0 : i32
    return %c0_i32, %c0_i32_0 : i32, i32
  }
  func.func @transform_7(%arg0: i32) -> (i32, i32) {
    %c0_i32 = arith.constant 0 : i32
    %c0_i32_0 = arith.constant 0 : i32
    %c0_i32_1 = arith.constant 0 : i32
    return %c0_i32, %c0_i32_0 : i32, i32
  }
  func.func @transform_8(%arg0: i32) -> (i32, i32) {
    %c0_i32 = arith.constant 0 : i32
    %c0_i32_0 = arith.constant 0 : i32
    %c0_i32_1 = arith.constant 0 : i32
    return %c0_i32, %c0_i32_0 : i32, i32
  }
  func.func @transform_9(%arg0: i32) -> (i32, i32) {
    %c0_i32 = arith.constant 0 : i32
    %c0_i32_0 = arith.constant 0 : i32
    %c0_i32_1 = arith.constant 0 : i32
    return %c0_i32, %c0_i32_0 : i32, i32
  }
  func.func @transform_10(%arg0: i32) -> (i32, i32) {
    %c0_i32 = arith.constant 0 : i32
    %c0_i32_0 = arith.constant 0 : i32
    %c0_i32_1 = arith.constant 0 : i32
    return %c0_i32, %c0_i32_0 : i32, i32
  }
  func.func @transform_11(%arg0: i32) -> (i32, i32) {
    %c0_i32 = arith.constant 0 : i32
    %c0_i32_0 = arith.constant 0 : i32
    %c0_i32_1 = arith.constant 0 : i32
    return %c0_i32, %c0_i32_0 : i32, i32
  }
  func.func @transform_12(%arg0: i32) -> (i32, i32) {
    %c0_i32 = arith.constant 0 : i32
    %c0_i32_0 = arith.constant 0 : i32
    %c0_i32_1 = arith.constant 0 : i32
    return %c0_i32, %c0_i32_0 : i32, i32
  }
  func.func @transform_13(%arg0: i32) -> (i32, i32) {
    %c0_i32 = arith.constant 0 : i32
    %c0_i32_0 = arith.constant 0 : i32
    %c0_i32_1 = arith.constant 0 : i32
    return %c0_i32, %c0_i32_0 : i32, i32
  }
  func.func @transform_14(%arg0: i32) -> (i32, i32) {
    %c0_i32 = arith.constant 0 : i32
    %c0_i32_0 = arith.constant 0 : i32
    %c0_i32_1 = arith.constant 0 : i32
    return %c0_i32, %c0_i32_0 : i32, i32
  }
  func.func @transform_15(%arg0: i32) -> (i32, i32) {
    %c0_i32 = arith.constant 0 : i32
    %c0_i32_0 = arith.constant 0 : i32
    %c0_i32_1 = arith.constant 0 : i32
    return %c0_i32, %c0_i32_0 : i32, i32
  }
  func.func @transform_16(%arg0: i32) -> (i32, i32) {
    %c0_i32 = arith.constant 0 : i32
    %c0_i32_0 = arith.constant 0 : i32
    %c0_i32_1 = arith.constant 0 : i32
    return %c0_i32, %c0_i32_0 : i32, i32
  }
  func.func @transform_17(%arg0: i32) -> (i32, i32) {
    %c0_i32 = arith.constant 0 : i32
    %c0_i32_0 = arith.constant 0 : i32
    %c0_i32_1 = arith.constant 0 : i32
    return %c0_i32, %c0_i32_0 : i32, i32
  }
  func.func @transform_18(%arg0: i32) -> (i32, i32) {
    %c0_i32 = arith.constant 0 : i32
    %c0_i32_0 = arith.constant 0 : i32
    %c0_i32_1 = arith.constant 0 : i32
    return %c0_i32, %c0_i32_0 : i32, i32
  }
  func.func @transform_19(%arg0: i32) -> (i32, i32) {
    %c0_i32 = arith.constant 0 : i32
    %c0_i32_0 = arith.constant 0 : i32
    return %arg0, %c0_i32 : i32, i32
  }
  func.func @transform_20(%arg0: i32) -> (i32, i32, i32) {
    %c0_i32 = arith.constant 0 : i32
    %c0_i32_0 = arith.constant 0 : i32
    %c0_i32_1 = arith.constant 0 : i32
    return %arg0, %c0_i32, %c0_i32_0 : i32, i32, i32
  }
}

</mosaic_0001>

<llo_original>
// kernel: tpu_custom_call.1
$region0: #{tpu_custom_call.1}
  #allocation0 [shape = 'u32[]', space=smem, size = 0x4, offset = 0x4, fixed_abs, tag = 'smem constant byte address 0x4 - core index']
  #allocation1 [shape = 'u32[144,128]{1,0:T(1,128)}', space=vmem, size = 0x12000, scoped, tag = 'internal scratch']
  %s0 = inlined_call_operand.vmem [shape: f32[4,8,32], index: 0, kind: input, shape index: {}]
  %s1 = inlined_call_operand.hbm [shape: f32[4,1,32], index: 1, kind: input, shape index: {}]
  %s2 = inlined_call_operand.hbm [shape: f32[4,1,32], index: 2, kind: input, shape index: {}]
  %s3 = inlined_call_operand.vmem [shape: f32[1,32], index: 3, kind: input, shape index: {}]
  %s4 = inlined_call_operand.hbm [shape: f32[1,32], index: 4, kind: input, shape index: {}]
  %s5 = inlined_call_operand.vmem [shape: bf16[32,32], index: 5, kind: input, shape index: {}]
  %s6 = inlined_call_operand.hbm [shape: bf16[32,32], index: 6, kind: input, shape index: {}]
  %s7 = inlined_call_operand.hbm [shape: bf16[32,32], index: 7, kind: input, shape index: {}]
  %s8 = inlined_call_operand.hbm [shape: f32[1,32], index: 8, kind: input, shape index: {}]
  %s9 = inlined_call_operand.hbm [shape: f32[1,32], index: 9, kind: input, shape index: {}]
  %s10 = inlined_call_operand.hbm [shape: f32[1,32], index: 10, kind: input, shape index: {}]
  %s11 = inlined_call_operand.vmem [shape: bf16[32,32], index: 11, kind: input, shape index: {}]
  %s12 = inlined_call_operand.hbm [shape: f32[1,32], index: 12, kind: input, shape index: {}]
  %s13 = inlined_call_operand.hbm [shape: f32[1,32], index: 13, kind: input, shape index: {}]
  %s14 = inlined_call_operand.vmem [shape: f32[1,32], index: 14, kind: input, shape index: {}]
  %s15 = inlined_call_operand.vmem [shape: bf16[32,64], index: 15, kind: input, shape index: {}]
  %s16 = inlined_call_operand.vmem [shape: f32[1,64], index: 16, kind: input, shape index: {}]
  %s17 = inlined_call_operand.vmem [shape: bf16[64,32], index: 17, kind: input, shape index: {}]
  %s18 = inlined_call_operand.vmem [shape: f32[1,32], index: 18, kind: input, shape index: {}]
  %s19 = inlined_call_operand.hbm [shape: f32[32,32], index: 19, kind: output, shape index: {0}]
  %s20 = inlined_call_operand.hbm [shape: f32[4,8,8], index: 20, kind: output, shape index: {1}]
  %21 = xla_tuple %s19, %s20
  %s22 = sld [smem:[#allocation0]]
  $region157: #{tpu_custom_call.1} parent=0
    _
  %s24 = ssub.s32 1, %s22
  %s25 = scalar_select 0, %s24, %s22
  $region1: #{tpu_custom_call.1} parent=0
    #allocation2 [shape = 'u8[2048]{0}', space=vmem, size = 0x800, scoped, tag = 'input window, operand 1']
    #allocation3 [shape = 's32[2]{0}', space=sflag, size = 0x8, scoped, tag = 'scoped memory for tpu_custom_call.1']
    #allocation4 [shape = 's32[2]{0}', space=sflag, size = 0x8, scoped, tag = 'scoped memory for tpu_custom_call.1']
    #allocation5 [shape = 'u8[2048]{0}', space=vmem, size = 0x800, scoped, tag = 'input window, operand 2, single buffered']
    #allocation6 [shape = 's32[1]{0}', space=sflag, size = 0x4, scoped, tag = 'scoped memory for tpu_custom_call.1']
    #allocation7 [shape = 'u8[512]{0}', space=vmem, size = 0x400, scoped, tag = 'input window, operand 4, single buffered']
    #allocation8 [shape = 'u8[8192]{0}', space=vmem, size = 0x2000, scoped, tag = 'input window, operand 6, single buffered']
    #allocation9 [shape = 's32[1]{0}', space=sflag, size = 0x4, scoped, tag = 'scoped memory for tpu_custom_call.1']
    #allocation10 [shape = 'u8[8192]{0}', space=vmem, size = 0x2000, scoped, tag = 'input window, operand 7, single buffered']
    #allocation11 [shape = 'u8[512]{0}', space=vmem, size = 0x400, scoped, tag = 'input window, operand 8, single buffered']
    #allocation12 [shape = 's32[1]{0}', space=sflag, size = 0x4, scoped, tag = 'scoped memory for tpu_custom_call.1']
    #allocation13 [shape = 'u8[512]{0}', space=vmem, size = 0x400, scoped, tag = 'input window, operand 9, single buffered']
    #allocation14 [shape = 'u8[512]{0}', space=vmem, size = 0x400, scoped, tag = 'input window, operand 10, single buffered']
    #allocation15 [shape = 's32[1]{0}', space=sflag, size = 0x4, scoped, tag = 'scoped memory for tpu_custom_call.1']
    #allocation16 [shape = 'u8[512]{0}', space=vmem, size = 0x400, scoped, tag = 'input window, operand 12, single buffered']
    #allocation17 [shape = 'u8[512]{0}', space=vmem, size = 0x400, scoped, tag = 'input window, operand 13, single buffered']
    #allocation18 [shape = 's32[1]{0}', space=sflag, size = 0x4, scoped, tag = 'scoped memory for tpu_custom_call.1']
    #allocation19 [shape = 'u8[16384]{0}', space=vmem, size = 0x4000, scoped, tag = 'output window, operand 0']
    #allocation20 [shape = 'u8[16384]{0}', space=vmem, size = 0x4000, scoped, tag = 'output window, operand 1']
    #allocation21 [shape = 's32[2]{0}', space=sflag, size = 0x8, scoped, tag = 'scoped memory for tpu_custom_call.1']
    %26 = vsyncpa [#allocation3], 0
    %s27 = scalar_lea.sflag [#allocation3], 1
    %28 = vsyncpa %s27, 0
    %29 = vsyncpa [#allocation6], 0
    %30 = vsyncpa [#allocation9], 0
    %31 = vsyncpa [#allocation12], 0
    %32 = vsyncpa [#allocation15], 0
    %33 = vsyncpa [#allocation18], 0
    %34 = vsyncpa [#allocation4], 0
    %s35 = scalar_lea.sflag [#allocation4], 1
    %36 = vsyncpa %s35, 0
    %37 = vsyncpa [#allocation21], 0
    %s38 = scalar_lea.sflag [#allocation21], 1
    %39 = vsyncpa %s38, 0
    loop: start=0, step=1, limit=4
    $region2: #{tpu_custom_call.1} parent=1 // loop_pre_header
      _
    $region3: #{tpu_custom_call.1} parent=1 // loop_header
      %s41 = sphi 0, %s45
      %p42 = scmp.ge.s32.totalorder %s41, 4
      %s51 = sphi 0, %s53
      %s54 = sphi 0, %s51
      %s55 = sphi 0, %s54
      %s71 = sphi 0, %s55
      %s77 = sphi 0, %s79
      %s80 = sphi 0, %s77
      %s81 = sphi 0, %s80
      %s97 = sphi 0, %s81
      %s101 = sphi 0, %s101
      %s103 = sphi 0, %s101
      %s104 = sphi 0, %s103
      %s118 = sphi 0, %s104
      %s122 = sphi 0, %s122
      %s124 = sphi 0, %s122
      %s125 = sphi 0, %s124
      %s139 = sphi 0, %s125
      %s143 = sphi 0, %s143
      %s145 = sphi 0, %s143
      %s146 = sphi 0, %s145
      %s160 = sphi 0, %s146
      %s164 = sphi 0, %s164
      %s166 = sphi 0, %s164
      %s167 = sphi 0, %s166
      %s181 = sphi 0, %s167
      %s185 = sphi 0, %s185
      %s187 = sphi 0, %s185
      %s188 = sphi 0, %s187
      %s202 = sphi 0, %s188
      %s206 = sphi 0, %s206
      %s208 = sphi 0, %s206
      %s209 = sphi 0, %s208
      %s223 = sphi 0, %s209
      %s227 = sphi 0, %s227
      %s229 = sphi 0, %s227
      %s230 = sphi 0, %s229
      %s244 = sphi 0, %s230
      %s248 = sphi 0, %s248
      %s250 = sphi 0, %s248
      %s251 = sphi 0, %s250
      %s265 = sphi 0, %s251
      %s269 = sphi 0, %s269
      %s271 = sphi 0, %s269
      %s272 = sphi 0, %s271
      %s286 = sphi 0, %s272
      %s290 = sphi 0, %s290
      %s292 = sphi 0, %s290
      %s293 = sphi 0, %s292
      %s307 = sphi 0, %s293
      %s311 = sphi 0, %s311
      %s313 = sphi 0, %s311
      %s314 = sphi 0, %s313
      %s328 = sphi 0, %s314
      %s332 = sphi 0, %s332
      %s334 = sphi 0, %s332
      %s335 = sphi 0, %s334
      %s349 = sphi 0, %s335
      %s353 = sphi 0, %s353
      %s355 = sphi 0, %s353
      %s356 = sphi 0, %s355
      %s370 = sphi 0, %s356
      %s374 = sphi 0, %s374
      %s376 = sphi 0, %s374
      %s377 = sphi 0, %s376
      %s391 = sphi 0, %s377
      %s395 = sphi 0, %s395
      %s397 = sphi 0, %s395
      %s398 = sphi 0, %s397
      %s412 = sphi 0, %s398
      %s416 = sphi 0, %s416
      %s418 = sphi 0, %s416
      %s419 = sphi 0, %s418
      %s433 = sphi 0, %s419
      %s437 = sphi 0, %s437
      %s439 = sphi 0, %s437
      %s440 = sphi 0, %s439
      %s454 = sphi 0, %s440
      %s460 = sphi 0, %s462
      %s463 = sphi 0, %s460
      %s464 = sphi 0, %s463
      %s480 = sphi 0, %s464
      %s486 = sphi 0, %s488
      %s489 = sphi 0, %s486
      %s490 = sphi 0, %s489
      %s506 = sphi 0, %s490
    $region4: #{tpu_custom_call.1} parent=1 // loop_header_branch
      %44 = sbr.rel (%p42) target = $region8
    $region5: #{tpu_custom_call.1} parent=1 // loop_body
      %s46 = ssub.s32 %s41, 1
      %s47 = ssub.s32 %s41, 2
      %s48 = sadd.s32 %s41, 1
      %s49 = ssub.s32 %s41, %s48
      %p50 = scmp.eq.s32.totalorder %s49, 0
      %s52 = sadd.s32 %s51, 1
      %s53 = scalar_select %p50, %s51, %s52
      %p56 = pneg %p50
      %p57 = scmp.eq.s32.totalorder %s41, 1
      %p58 = por %p56, %p57
      %p59 = scmp.ne.s32.totalorder %s51, %s54
      %p60 = scmp.eq.s32.totalorder %s41, 0
      %p61 = por %p59, %p60
      %p62 = scmp.ne.s32.totalorder %s51, %s54
      %p63 = scmp.eq.s32.totalorder %s46, 1
      %p64 = por %p62, %p63
      %p65 = scmp.ne.s32.totalorder %s54, %s55
      %p66 = scmp.eq.s32.totalorder %s46, 0
      %p67 = por %p65, %p66
      %p68 = scmp.ne.s32.totalorder %s54, %s55
      %p69 = scmp.eq.s32.totalorder %s47, 1
      %p70 = por %p68, %p69
      %p72 = scmp.ne.s32.totalorder %s55, %s71
      %p73 = scmp.eq.s32.totalorder %s47, 0
      %p74 = por %p72, %p73
      %s75 = ssub.s32 %s41, %s48
      %p76 = scmp.eq.s32.totalorder %s75, 0
      %s78 = sadd.s32 %s77, 1
      %s79 = scalar_select %p76, %s77, %s78
      %p82 = pneg %p76
      %p83 = scmp.eq.s32.totalorder %s41, 1
      %p84 = por %p82, %p83
      %p85 = scmp.ne.s32.totalorder %s77, %s80
      %p86 = scmp.eq.s32.totalorder %s41, 0
      %p87 = por %p85, %p86
      %p88 = scmp.ne.s32.totalorder %s77, %s80
      %p89 = scmp.eq.s32.totalorder %s46, 1
      %p90 = por %p88, %p89
      %p91 = scmp.ne.s32.totalorder %s80, %s81
      %p92 = scmp.eq.s32.totalorder %s46, 0
      %p93 = por %p91, %p92
      %p94 = scmp.ne.s32.totalorder %s80, %s81
      %p95 = scmp.eq.s32.totalorder %s47, 1
      %p96 = por %p94, %p95
      %p98 = scmp.ne.s32.totalorder %s81, %s97
      %p99 = scmp.eq.s32.totalorder %s47, 0
      %p100 = por %p98, %p99
      %s102 = sadd.s32 %s101, 1
      %p105 = scmp.eq.s32.totalorder %s41, 1
      %p106 = scmp.ne.s32.totalorder %s101, %s103
      %p107 = scmp.eq.s32.totalorder %s41, 0
      %p108 = por %p106, %p107
      %p109 = scmp.ne.s32.totalorder %s101, %s103
      %p110 = scmp.eq.s32.totalorder %s46, 1
      %p111 = por %p109, %p110
      %p112 = scmp.ne.s32.totalorder %s103, %s104
      %p113 = scmp.eq.s32.totalorder %s46, 0
      %p114 = por %p112, %p113
      %p115 = scmp.ne.s32.totalorder %s103, %s104
      %p116 = scmp.eq.s32.totalorder %s47, 1
      %p117 = por %p115, %p116
      %p119 = scmp.ne.s32.totalorder %s104, %s118
      %p120 = scmp.eq.s32.totalorder %s47, 0
      %p121 = por %p119, %p120
      %s123 = sadd.s32 %s122, 1
      %p126 = scmp.eq.s32.totalorder %s41, 1
      %p127 = scmp.ne.s32.totalorder %s122, %s124
      %p128 = scmp.eq.s32.totalorder %s41, 0
      %p129 = por %p127, %p128
      %p130 = scmp.ne.s32.totalorder %s122, %s124
      %p131 = scmp.eq.s32.totalorder %s46, 1
      %p132 = por %p130, %p131
      %p133 = scmp.ne.s32.totalorder %s124, %s125
      %p134 = scmp.eq.s32.totalorder %s46, 0
      %p135 = por %p133, %p134
      %p136 = scmp.ne.s32.totalorder %s124, %s125
      %p137 = scmp.eq.s32.totalorder %s47, 1
      %p138 = por %p136, %p137
      %p140 = scmp.ne.s32.totalorder %s125, %s139
      %p141 = scmp.eq.s32.totalorder %s47, 0
      %p142 = por %p140, %p141
      %s144 = sadd.s32 %s143, 1
      %p147 = scmp.eq.s32.totalorder %s41, 1
      %p148 = scmp.ne.s32.totalorder %s143, %s145
      %p149 = scmp.eq.s32.totalorder %s41, 0
      %p150 = por %p148, %p149
      %p151 = scmp.ne.s32.totalorder %s143, %s145
      %p152 = scmp.eq.s32.totalorder %s46, 1
      %p153 = por %p151, %p152
      %p154 = scmp.ne.s32.totalorder %s145, %s146
      %p155 = scmp.eq.s32.totalorder %s46, 0
      %p156 = por %p154, %p155
      %p157 = scmp.ne.s32.totalorder %s145, %s146
      %p158 = scmp.eq.s32.totalorder %s47, 1
      %p159 = por %p157, %p158
      %p161 = scmp.ne.s32.totalorder %s146, %s160
      %p162 = scmp.eq.s32.totalorder %s47, 0
      %p163 = por %p161, %p162
      %s165 = sadd.s32 %s164, 1
      %p168 = scmp.eq.s32.totalorder %s41, 1
      %p169 = scmp.ne.s32.totalorder %s164, %s166
      %p170 = scmp.eq.s32.totalorder %s41, 0
      %p171 = por %p169, %p170
      %p172 = scmp.ne.s32.totalorder %s164, %s166
      %p173 = scmp.eq.s32.totalorder %s46, 1
      %p174 = por %p172, %p173
      %p175 = scmp.ne.s32.totalorder %s166, %s167
      %p176 = scmp.eq.s32.totalorder %s46, 0
      %p177 = por %p175, %p176
      %p178 = scmp.ne.s32.totalorder %s166, %s167
      %p179 = scmp.eq.s32.totalorder %s47, 1
      %p180 = por %p178, %p179
      %p182 = scmp.ne.s32.totalorder %s167, %s181
      %p183 = scmp.eq.s32.totalorder %s47, 0
      %p184 = por %p182, %p183
      %s186 = sadd.s32 %s185, 1
      %p189 = scmp.eq.s32.totalorder %s41, 1
      %p190 = scmp.ne.s32.totalorder %s185, %s187
      %p191 = scmp.eq.s32.totalorder %s41, 0
      %p192 = por %p190, %p191
      %p193 = scmp.ne.s32.totalorder %s185, %s187
      %p194 = scmp.eq.s32.totalorder %s46, 1
      %p195 = por %p193, %p194
      %p196 = scmp.ne.s32.totalorder %s187, %s188
      %p197 = scmp.eq.s32.totalorder %s46, 0
      %p198 = por %p196, %p197
      %p199 = scmp.ne.s32.totalorder %s187, %s188
      %p200 = scmp.eq.s32.totalorder %s47, 1
      %p201 = por %p199, %p200
      %p203 = scmp.ne.s32.totalorder %s188, %s202
      %p204 = scmp.eq.s32.totalorder %s47, 0
      %p205 = por %p203, %p204
      %s207 = sadd.s32 %s206, 1
      %p210 = scmp.eq.s32.totalorder %s41, 1
      %p211 = scmp.ne.s32.totalorder %s206, %s208
      %p212 = scmp.eq.s32.totalorder %s41, 0
      %p213 = por %p211, %p212
      %p214 = scmp.ne.s32.totalorder %s206, %s208
      %p215 = scmp.eq.s32.totalorder %s46, 1
      %p216 = por %p214, %p215
      %p217 = scmp.ne.s32.totalorder %s208, %s209
      %p218 = scmp.eq.s32.totalorder %s46, 0
      %p219 = por %p217, %p218
      %p220 = scmp.ne.s32.totalorder %s208, %s209
      %p221 = scmp.eq.s32.totalorder %s47, 1
      %p222 = por %p220, %p221
      %p224 = scmp.ne.s32.totalorder %s209, %s223
      %p225 = scmp.eq.s32.totalorder %s47, 0
      %p226 = por %p224, %p225
      %s228 = sadd.s32 %s227, 1
      %p231 = scmp.eq.s32.totalorder %s41, 1
      %p232 = scmp.ne.s32.totalorder %s227, %s229
      %p233 = scmp.eq.s32.totalorder %s41, 0
      %p234 = por %p232, %p233
      %p235 = scmp.ne.s32.totalorder %s227, %s229
      %p236 = scmp.eq.s32.totalorder %s46, 1
      %p237 = por %p235, %p236
      %p238 = scmp.ne.s32.totalorder %s229, %s230
      %p239 = scmp.eq.s32.totalorder %s46, 0
      %p240 = por %p238, %p239
      %p241 = scmp.ne.s32.totalorder %s229, %s230
      %p242 = scmp.eq.s32.totalorder %s47, 1
      %p243 = por %p241, %p242
      %p245 = scmp.ne.s32.totalorder %s230, %s244
      %p246 = scmp.eq.s32.totalorder %s47, 0
      %p247 = por %p245, %p246
      %s249 = sadd.s32 %s248, 1
      %p252 = scmp.eq.s32.totalorder %s41, 1
      %p253 = scmp.ne.s32.totalorder %s248, %s250
      %p254 = scmp.eq.s32.totalorder %s41, 0
      %p255 = por %p253, %p254
      %p256 = scmp.ne.s32.totalorder %s248, %s250
      %p257 = scmp.eq.s32.totalorder %s46, 1
      %p258 = por %p256, %p257
      %p259 = scmp.ne.s32.totalorder %s250, %s251
      %p260 = scmp.eq.s32.totalorder %s46, 0
      %p261 = por %p259, %p260
      %p262 = scmp.ne.s32.totalorder %s250, %s251
      %p263 = scmp.eq.s32.totalorder %s47, 1
      %p264 = por %p262, %p263
      %p266 = scmp.ne.s32.totalorder %s251, %s265
      %p267 = scmp.eq.s32.totalorder %s47, 0
      %p268 = por %p266, %p267
      %s270 = sadd.s32 %s269, 1
      %p273 = scmp.eq.s32.totalorder %s41, 1
      %p274 = scmp.ne.s32.totalorder %s269, %s271
      %p275 = scmp.eq.s32.totalorder %s41, 0
      %p276 = por %p274, %p275
      %p277 = scmp.ne.s32.totalorder %s269, %s271
      %p278 = scmp.eq.s32.totalorder %s46, 1
      %p279 = por %p277, %p278
      %p280 = scmp.ne.s32.totalorder %s271, %s272
      %p281 = scmp.eq.s32.totalorder %s46, 0
      %p282 = por %p280, %p281
      %p283 = scmp.ne.s32.totalorder %s271, %s272
      %p284 = scmp.eq.s32.totalorder %s47, 1
      %p285 = por %p283, %p284
      %p287 = scmp.ne.s32.totalorder %s272, %s286
      %p288 = scmp.eq.s32.totalorder %s47, 0
      %p289 = por %p287, %p288
      %s291 = sadd.s32 %s290, 1
      %p294 = scmp.eq.s32.totalorder %s41, 1
      %p295 = scmp.ne.s32.totalorder %s290, %s292
      %p296 = scmp.eq.s32.totalorder %s41, 0
      %p297 = por %p295, %p296
      %p298 = scmp.ne.s32.totalorder %s290, %s292
      %p299 = scmp.eq.s32.totalorder %s46, 1
      %p300 = por %p298, %p299
      %p301 = scmp.ne.s32.totalorder %s292, %s293
      %p302 = scmp.eq.s32.totalorder %s46, 0
      %p303 = por %p301, %p302
      %p304 = scmp.ne.s32.totalorder %s292, %s293
      %p305 = scmp.eq.s32.totalorder %s47, 1
      %p306 = por %p304, %p305
      %p308 = scmp.ne.s32.totalorder %s293, %s307
      %p309 = scmp.eq.s32.totalorder %s47, 0
      %p310 = por %p308, %p309
      %s312 = sadd.s32 %s311, 1
      %p315 = scmp.eq.s32.totalorder %s41, 1
      %p316 = scmp.ne.s32.totalorder %s311, %s313
      %p317 = scmp.eq.s32.totalorder %s41, 0
      %p318 = por %p316, %p317
      %p319 = scmp.ne.s32.totalorder %s311, %s313
      %p320 = scmp.eq.s32.totalorder %s46, 1
      %p321 = por %p319, %p320
      %p322 = scmp.ne.s32.totalorder %s313, %s314
      %p323 = scmp.eq.s32.totalorder %s46, 0
      %p324 = por %p322, %p323
      %p325 = scmp.ne.s32.totalorder %s313, %s314
      %p326 = scmp.eq.s32.totalorder %s47, 1
      %p327 = por %p325, %p326
      %p329 = scmp.ne.s32.totalorder %s314, %s328
      %p330 = scmp.eq.s32.totalorder %s47, 0
      %p331 = por %p329, %p330
      %s333 = sadd.s32 %s332, 1
      %p336 = scmp.eq.s32.totalorder %s41, 1
      %p337 = scmp.ne.s32.totalorder %s332, %s334
      %p338 = scmp.eq.s32.totalorder %s41, 0
      %p339 = por %p337, %p338
      %p340 = scmp.ne.s32.totalorder %s332, %s334
      %p341 = scmp.eq.s32.totalorder %s46, 1
      %p342 = por %p340, %p341
      %p343 = scmp.ne.s32.totalorder %s334, %s335
      %p344 = scmp.eq.s32.totalorder %s46, 0
      %p345 = por %p343, %p344
      %p346 = scmp.ne.s32.totalorder %s334, %s335
      %p347 = scmp.eq.s32.totalorder %s47, 1
      %p348 = por %p346, %p347
      %p350 = scmp.ne.s32.totalorder %s335, %s349
      %p351 = scmp.eq.s32.totalorder %s47, 0
      %p352 = por %p350, %p351
      %s354 = sadd.s32 %s353, 1
      %p357 = scmp.eq.s32.totalorder %s41, 1
      %p358 = scmp.ne.s32.totalorder %s353, %s355
      %p359 = scmp.eq.s32.totalorder %s41, 0
      %p360 = por %p358, %p359
      %p361 = scmp.ne.s32.totalorder %s353, %s355
      %p362 = scmp.eq.s32.totalorder %s46, 1
      %p363 = por %p361, %p362
      %p364 = scmp.ne.s32.totalorder %s355, %s356
      %p365 = scmp.eq.s32.totalorder %s46, 0
      %p366 = por %p364, %p365
      %p367 = scmp.ne.s32.totalorder %s355, %s356
      %p368 = scmp.eq.s32.totalorder %s47, 1
      %p369 = por %p367, %p368
      %p371 = scmp.ne.s32.totalorder %s356, %s370
      %p372 = scmp.eq.s32.totalorder %s47, 0
      %p373 = por %p371, %p372
      %s375 = sadd.s32 %s374, 1
      %p378 = scmp.eq.s32.totalorder %s41, 1
      %p379 = scmp.ne.s32.totalorder %s374, %s376
      %p380 = scmp.eq.s32.totalorder %s41, 0
      %p381 = por %p379, %p380
      %p382 = scmp.ne.s32.totalorder %s374, %s376
      %p383 = scmp.eq.s32.totalorder %s46, 1
      %p384 = por %p382, %p383
      %p385 = scmp.ne.s32.totalorder %s376, %s377
      %p386 = scmp.eq.s32.totalorder %s46, 0
      %p387 = por %p385, %p386
      %p388 = scmp.ne.s32.totalorder %s376, %s377
      %p389 = scmp.eq.s32.totalorder %s47, 1
      %p390 = por %p388, %p389
      %p392 = scmp.ne.s32.totalorder %s377, %s391
      %p393 = scmp.eq.s32.totalorder %s47, 0
      %p394 = por %p392, %p393
      %s396 = sadd.s32 %s395, 1
      %p399 = scmp.eq.s32.totalorder %s41, 1
      %p400 = scmp.ne.s32.totalorder %s395, %s397
      %p401 = scmp.eq.s32.totalorder %s41, 0
      %p402 = por %p400, %p401
      %p403 = scmp.ne.s32.totalorder %s395, %s397
      %p404 = scmp.eq.s32.totalorder %s46, 1
      %p405 = por %p403, %p404
      %p406 = scmp.ne.s32.totalorder %s397, %s398
      %p407 = scmp.eq.s32.totalorder %s46, 0
      %p408 = por %p406, %p407
      %p409 = scmp.ne.s32.totalorder %s397, %s398
      %p410 = scmp.eq.s32.totalorder %s47, 1
      %p411 = por %p409, %p410
      %p413 = scmp.ne.s32.totalorder %s398, %s412
      %p414 = scmp.eq.s32.totalorder %s47, 0
      %p415 = por %p413, %p414
      %s417 = sadd.s32 %s416, 1
      %p420 = scmp.eq.s32.totalorder %s41, 1
      %p421 = scmp.ne.s32.totalorder %s416, %s418
      %p422 = scmp.eq.s32.totalorder %s41, 0
      %p423 = por %p421, %p422
      %p424 = scmp.ne.s32.totalorder %s416, %s418
      %p425 = scmp.eq.s32.totalorder %s46, 1
      %p426 = por %p424, %p425
      %p427 = scmp.ne.s32.totalorder %s418, %s419
      %p428 = scmp.eq.s32.totalorder %s46, 0
      %p429 = por %p427, %p428
      %p430 = scmp.ne.s32.totalorder %s418, %s419
      %p431 = scmp.eq.s32.totalorder %s47, 1
      %p432 = por %p430, %p431
      %p434 = scmp.ne.s32.totalorder %s419, %s433
      %p435 = scmp.eq.s32.totalorder %s47, 0
      %p436 = por %p434, %p435
      %s438 = sadd.s32 %s437, 1
      %p441 = scmp.eq.s32.totalorder %s41, 1
      %p442 = scmp.ne.s32.totalorder %s437, %s439
      %p443 = scmp.eq.s32.totalorder %s41, 0
      %p444 = por %p442, %p443
      %p445 = scmp.ne.s32.totalorder %s437, %s439
      %p446 = scmp.eq.s32.totalorder %s46, 1
      %p447 = por %p445, %p446
      %p448 = scmp.ne.s32.totalorder %s439, %s440
      %p449 = scmp.eq.s32.totalorder %s46, 0
      %p450 = por %p448, %p449
      %p451 = scmp.ne.s32.totalorder %s439, %s440
      %p452 = scmp.eq.s32.totalorder %s47, 1
      %p453 = por %p451, %p452
      %p455 = scmp.ne.s32.totalorder %s440, %s454
      %p456 = scmp.eq.s32.totalorder %s47, 0
      %p457 = por %p455, %p456
      %s458 = ssub.s32 %s41, %s48
      %p459 = scmp.eq.s32.totalorder %s458, 0
      %s461 = sadd.s32 %s460, 1
      %s462 = scalar_select %p459, %s460, %s461
      %p465 = pneg %p459
      %p466 = scmp.eq.s32.totalorder %s41, 1
      %p467 = por %p465, %p466
      %p468 = scmp.ne.s32.totalorder %s460, %s463
      %p469 = scmp.eq.s32.totalorder %s41, 0
      %p470 = por %p468, %p469
      %p471 = scmp.ne.s32.totalorder %s460, %s463
      %p472 = scmp.eq.s32.totalorder %s46, 1
      %p473 = por %p471, %p472
      %p474 = scmp.ne.s32.totalorder %s463, %s464
      %p475 = scmp.eq.s32.totalorder %s46, 0
      %p476 = por %p474, %p475
      %p477 = scmp.ne.s32.totalorder %s463, %s464
      %p478 = scmp.eq.s32.totalorder %s47, 1
      %p479 = por %p477, %p478
      %p481 = scmp.ne.s32.totalorder %s464, %s480
      %p482 = scmp.eq.s32.totalorder %s47, 0
      %p483 = por %p481, %p482
      %s484 = ssub.s32 %s41, %s48
      %p485 = scmp.eq.s32.totalorder %s484, 0
      %s487 = sadd.s32 %s486, 1
      %s488 = scalar_select %p485, %s486, %s487
      %p491 = pneg %p485
      %p492 = scmp.eq.s32.totalorder %s41, 1
      %p493 = por %p491, %p492
      %p494 = scmp.ne.s32.totalorder %s486, %s489
      %p495 = scmp.eq.s32.totalorder %s41, 0
      %p496 = por %p494, %p495
      %p497 = scmp.ne.s32.totalorder %s486, %s489
      %p498 = scmp.eq.s32.totalorder %s46, 1
      %p499 = por %p497, %p498
      %p500 = scmp.ne.s32.totalorder %s489, %s490
      %p501 = scmp.eq.s32.totalorder %s46, 0
      %p502 = por %p500, %p501
      %p503 = scmp.ne.s32.totalorder %s489, %s490
      %p504 = scmp.eq.s32.totalorder %s47, 1
      %p505 = por %p503, %p504
      %p507 = scmp.ne.s32.totalorder %s490, %s506
      %p508 = scmp.eq.s32.totalorder %s47, 0
      %p509 = por %p507, %p508
      %p510 = scmp.le.s32.totalorder 1, %s41
      %p511 = scmp.lt.s32.totalorder %s41, 3
      %p512 = pnand %p510, %p511
      %p513 = pneg %p512
      // Predicated region
      $region9: #{tpu_custom_call.1} parent=5 // pred_check
        _
      $region10: #{tpu_custom_call.1} parent=5 // pred_check_branch
        %515 = sbr.rel (%p512) target = $region12
      $region11: #{tpu_custom_call.1} parent=5 // pred_region
        %s516 = ssub.s32 %s41, 1
        // Predicated region
        $region13: #{tpu_custom_call.1} parent=11 // pred_check
          %p517 = pneg %p114
        $region14: #{tpu_custom_call.1} parent=11 // pred_check_branch
          %519 = sbr.rel (%p517) target = $region16
        $region15: #{tpu_custom_call.1} parent=11 // pred_region
          %s521 = ssub.s32 64, 64
          %522 = vsyncadd [#allocation6], %s521
          %s523 = sshll.u32 [#allocation5], 4
          %s524 = int_to_ptr.vmem [resolvable:$true] %s523
          %529 = dma.hbm_to_vmem [thread:$0]  %s2, 64, %s524, [#allocation6], 16, 16, 1
        $region16: #{tpu_custom_call.1} parent=11 // pred_fallthru
          _
        // Predicated region
        $region17: #{tpu_custom_call.1} parent=11 // pred_check
          %p530 = pneg %p135
        $region18: #{tpu_custom_call.1} parent=11 // pred_check_branch
          %532 = sbr.rel (%p530) target = $region20
        $region19: #{tpu_custom_call.1} parent=11 // pred_region
          _
        $region20: #{tpu_custom_call.1} parent=11 // pred_fallthru
          _
        // Predicated region
        $region21: #{tpu_custom_call.1} parent=11 // pred_check
          %p533 = pneg %p156
        $region22: #{tpu_custom_call.1} parent=11 // pred_check_branch
          %535 = sbr.rel (%p533) target = $region24
        $region23: #{tpu_custom_call.1} parent=11 // pred_region
          %s537 = ssub.s32 16, 16
          %538 = vsyncadd [#allocation6], %s537
          %s540 = sshll.u32 [#allocation7], 4
          %s541 = int_to_ptr.vmem [resolvable:$true] %s540
          %543 = dma.hbm_to_vmem [thread:$0]  %s4, 16, %s541, [#allocation6]
        $region24: #{tpu_custom_call.1} parent=11 // pred_fallthru
          _
        // Predicated region
        $region25: #{tpu_custom_call.1} parent=11 // pred_check
          %p544 = pneg %p177
        $region26: #{tpu_custom_call.1} parent=11 // pred_check_branch
          %546 = sbr.rel (%p544) target = $region28
        $region27: #{tpu_custom_call.1} parent=11 // pred_region
          _
        $region28: #{tpu_custom_call.1} parent=11 // pred_fallthru
          _
        // Predicated region
        $region29: #{tpu_custom_call.1} parent=11 // pred_check
          %p547 = pneg %p198
        $region30: #{tpu_custom_call.1} parent=11 // pred_check_branch
          %549 = sbr.rel (%p547) target = $region32
        $region31: #{tpu_custom_call.1} parent=11 // pred_region
          %s551 = ssub.s32 256, 256
          %552 = vsyncadd [#allocation9], %s551
          %s553 = sshll.u32 [#allocation8], 4
          %s554 = int_to_ptr.vmem [resolvable:$true] %s553
          %559 = dma.hbm_to_vmem [thread:$0]  %s6, 256, %s554, [#allocation9], 64, 64, 4
        $region32: #{tpu_custom_call.1} parent=11 // pred_fallthru
          _
        // Predicated region
        $region33: #{tpu_custom_call.1} parent=11 // pred_check
          %p560 = pneg %p219
        $region34: #{tpu_custom_call.1} parent=11 // pred_check_branch
          %562 = sbr.rel (%p560) target = $region36
        $region35: #{tpu_custom_call.1} parent=11 // pred_region
          %s564 = ssub.s32 256, 256
          %565 = vsyncadd [#allocation9], %s564
          %s566 = sshll.u32 [#allocation10], 4
          %s567 = int_to_ptr.vmem [resolvable:$true] %s566
          %572 = dma.hbm_to_vmem [thread:$0]  %s7, 256, %s567, [#allocation9], 64, 64, 4
        $region36: #{tpu_custom_call.1} parent=11 // pred_fallthru
          _
        // Predicated region
        $region37: #{tpu_custom_call.1} parent=11 // pred_check
          %p573 = pneg %p240
        $region38: #{tpu_custom_call.1} parent=11 // pred_check_branch
          %575 = sbr.rel (%p573) target = $region40
        $region39: #{tpu_custom_call.1} parent=11 // pred_region
          %s577 = ssub.s32 16, 16
          %578 = vsyncadd [#allocation12], %s577
          %s580 = sshll.u32 [#allocation11], 4
          %s581 = int_to_ptr.vmem [resolvable:$true] %s580
          %583 = dma.hbm_to_vmem [thread:$0]  %s8, 16, %s581, [#allocation12]
        $region40: #{tpu_custom_call.1} parent=11 // pred_fallthru
          _
        // Predicated region
        $region41: #{tpu_custom_call.1} parent=11 // pred_check
          %p584 = pneg %p261
        $region42: #{tpu_custom_call.1} parent=11 // pred_check_branch
          %586 = sbr.rel (%p584) target = $region44
        $region43: #{tpu_custom_call.1} parent=11 // pred_region
          %s588 = ssub.s32 16, 16
          %589 = vsyncadd [#allocation12], %s588
          %s591 = sshll.u32 [#allocation13], 4
          %s592 = int_to_ptr.vmem [resolvable:$true] %s591
          %594 = dma.hbm_to_vmem [thread:$0]  %s9, 16, %s592, [#allocation12]
        $region44: #{tpu_custom_call.1} parent=11 // pred_fallthru
          _
        // Predicated region
        $region45: #{tpu_custom_call.1} parent=11 // pred_check
          %p595 = pneg %p282
        $region46: #{tpu_custom_call.1} parent=11 // pred_check_branch
          %597 = sbr.rel (%p595) target = $region48
        $region47: #{tpu_custom_call.1} parent=11 // pred_region
          %s599 = ssub.s32 16, 16
          %600 = vsyncadd [#allocation15], %s599
          %s602 = sshll.u32 [#allocation14], 4
          %s603 = int_to_ptr.vmem [resolvable:$true] %s602
          %605 = dma.hbm_to_vmem [thread:$0]  %s10, 16, %s603, [#allocation15]
        $region48: #{tpu_custom_call.1} parent=11 // pred_fallthru
          _
        // Predicated region
        $region49: #{tpu_custom_call.1} parent=11 // pred_check
          %p606 = pneg %p303
        $region50: #{tpu_custom_call.1} parent=11 // pred_check_branch
          %608 = sbr.rel (%p606) target = $region52
        $region51: #{tpu_custom_call.1} parent=11 // pred_region
          _
        $region52: #{tpu_custom_call.1} parent=11 // pred_fallthru
          _
        // Predicated region
        $region53: #{tpu_custom_call.1} parent=11 // pred_check
          %p609 = pneg %p324
        $region54: #{tpu_custom_call.1} parent=11 // pred_check_branch
          %611 = sbr.rel (%p609) target = $region56
        $region55: #{tpu_custom_call.1} parent=11 // pred_region
          %s613 = ssub.s32 16, 16
          %614 = vsyncadd [#allocation15], %s613
          %s616 = sshll.u32 [#allocation16], 4
          %s617 = int_to_ptr.vmem [resolvable:$true] %s616
          %619 = dma.hbm_to_vmem [thread:$0]  %s12, 16, %s617, [#allocation15]
        $region56: #{tpu_custom_call.1} parent=11 // pred_fallthru
          _
        // Predicated region
        $region57: #{tpu_custom_call.1} parent=11 // pred_check
          %p620 = pneg %p345
        $region58: #{tpu_custom_call.1} parent=11 // pred_check_branch
          %622 = sbr.rel (%p620) target = $region60
        $region59: #{tpu_custom_call.1} parent=11 // pred_region
          %s624 = ssub.s32 16, 16
          %625 = vsyncadd [#allocation18], %s624
          %s627 = sshll.u32 [#allocation17], 4
          %s628 = int_to_ptr.vmem [resolvable:$true] %s627
          %630 = dma.hbm_to_vmem [thread:$0]  %s13, 16, %s628, [#allocation18]
        $region60: #{tpu_custom_call.1} parent=11 // pred_fallthru
          _
        // Predicated region
        $region61: #{tpu_custom_call.1} parent=11 // pred_check
          %p631 = pneg %p366
        $region62: #{tpu_custom_call.1} parent=11 // pred_check_branch
          %633 = sbr.rel (%p631) target = $region64
        $region63: #{tpu_custom_call.1} parent=11 // pred_region
          _
        $region64: #{tpu_custom_call.1} parent=11 // pred_fallthru
          _
        // Predicated region
        $region65: #{tpu_custom_call.1} parent=11 // pred_check
          %p634 = pneg %p387
        $region66: #{tpu_custom_call.1} parent=11 // pred_check_branch
          %636 = sbr.rel (%p634) target = $region68
        $region67: #{tpu_custom_call.1} parent=11 // pred_region
          _
        $region68: #{tpu_custom_call.1} parent=11 // pred_fallthru
          _
        // Predicated region
        $region69: #{tpu_custom_call.1} parent=11 // pred_check
          %p637 = pneg %p408
        $region70: #{tpu_custom_call.1} parent=11 // pred_check_branch
          %639 = sbr.rel (%p637) target = $region72
        $region71: #{tpu_custom_call.1} parent=11 // pred_region
          _
        $region72: #{tpu_custom_call.1} parent=11 // pred_fallthru
          _
        // Predicated region
        $region73: #{tpu_custom_call.1} parent=11 // pred_check
          %p640 = pneg %p429
        $region74: #{tpu_custom_call.1} parent=11 // pred_check_branch
          %642 = sbr.rel (%p640) target = $region76
        $region75: #{tpu_custom_call.1} parent=11 // pred_region
          _
        $region76: #{tpu_custom_call.1} parent=11 // pred_fallthru
          _
        // Predicated region
        $region77: #{tpu_custom_call.1} parent=11 // pred_check
          %p643 = pneg %p450
        $region78: #{tpu_custom_call.1} parent=11 // pred_check_branch
          %645 = sbr.rel (%p643) target = $region80
        $region79: #{tpu_custom_call.1} parent=11 // pred_region
          _
        $region80: #{tpu_custom_call.1} parent=11 // pred_fallthru
          _
      $region12: #{tpu_custom_call.1} parent=5 // pred_fallthru
        _
      %p646 = scmp.lt.s32.totalorder %s41, 2
      // Predicated region
      $region81: #{tpu_custom_call.1} parent=5 // pred_check
        %p647 = pneg %p646
      $region82: #{tpu_custom_call.1} parent=5 // pred_check_branch
        %649 = sbr.rel (%p647) target = $region84
      $region83: #{tpu_custom_call.1} parent=5 // pred_region
        // Predicated region
        $region85: #{tpu_custom_call.1} parent=83 // pred_check
          %p650 = pneg %p61
        $region86: #{tpu_custom_call.1} parent=83 // pred_check_branch
          %652 = sbr.rel (%p650) target = $region88
        $region87: #{tpu_custom_call.1} parent=83 // pred_region
          %s653 = smul.u32 2, %s41
          %p654 = scmp.lt.s32.totalorder %s653, 3
          %s655 = scalar_select %p654, %s653, 3
          %s656 = smul.addr %s655, 8
          %s657 = scalar_lea.vmem %s0, %s656
          %s658 = smul.u32 2, %s41
        $region88: #{tpu_custom_call.1} parent=83 // pred_fallthru
          _
        // Predicated region
        $region89: #{tpu_custom_call.1} parent=83 // pred_check
          %p659 = pneg %p87
        $region90: #{tpu_custom_call.1} parent=83 // pred_check_branch
          %661 = sbr.rel (%p659) target = $region92
        $region91: #{tpu_custom_call.1} parent=83 // pred_region
          %s662 = sand.u32 %s77, 1
          %s663 = scalar_lea.sflag [#allocation3], %s662
          %s664 = sand.u32 %s77, 1
          %s665 = smul.addr %s664, 2
          %s666 = scalar_lea.vmem [#allocation2], %s665
          %s667 = smul.u32 2, %s41
          %s669 = ssub.s32 32, 32
          %670 = vsyncadd %s663, %s669
          %s671 = smul.addr %s667, 16
          %s672 = scalar_lea.hbm %s1, %s671
          %s673 = sshll.u32 %s666, 4
          %s674 = int_to_ptr.vmem [resolvable:$true] %s673
          %679 = dma.hbm_to_vmem [thread:$0]  %s672, 32, %s674, %s663, 16, 16, 1
        $region92: #{tpu_custom_call.1} parent=83 // pred_fallthru
          _
      $region84: #{tpu_custom_call.1} parent=5 // pred_fallthru
        _
      %p680 = scmp.le.s32.totalorder 1, %s41
      %p681 = scmp.lt.s32.totalorder %s41, 3
      %p682 = pnand %p680, %p681
      %p683 = pneg %p682
      // Predicated region
      $region93: #{tpu_custom_call.1} parent=5 // pred_check
        _
      $region94: #{tpu_custom_call.1} parent=5 // pred_check_branch
        %685 = sbr.rel (%p682) target = $region96
      $region95: #{tpu_custom_call.1} parent=5 // pred_region
        %s686 = ssub.s32 %s41, 1
        %s687 = sand.u32 %s80, 1
        %s688 = scalar_lea.sflag [#allocation3], %s687
        %s689 = sand.u32 %s80, 1
        %s690 = smul.addr %s689, 2
        %s691 = scalar_lea.vmem [#allocation2], %s690
        // Predicated region
        $region97: #{tpu_custom_call.1} parent=95 // pred_check
          %p692 = pneg %p93
        $region98: #{tpu_custom_call.1} parent=95 // pred_check_branch
          %694 = sbr.rel (%p692) target = $region100
        $region99: #{tpu_custom_call.1} parent=95 // pred_region
          %695 = dma.done %s688, 32
        $region100: #{tpu_custom_call.1} parent=95 // pred_fallthru
          _
        // Predicated region
        $region101: #{tpu_custom_call.1} parent=95 // pred_check
          %p696 = pneg %p114
        $region102: #{tpu_custom_call.1} parent=95 // pred_check_branch
          %698 = sbr.rel (%p696) target = $region104
        $region103: #{tpu_custom_call.1} parent=95 // pred_region
          %699 = dma.done [#allocation6], 64
        $region104: #{tpu_custom_call.1} parent=95 // pred_fallthru
          _
        // Predicated region
        $region105: #{tpu_custom_call.1} parent=95 // pred_check
          %p700 = pneg %p156
        $region106: #{tpu_custom_call.1} parent=95 // pred_check_branch
          %702 = sbr.rel (%p700) target = $region108
        $region107: #{tpu_custom_call.1} parent=95 // pred_region
          %703 = dma.done [#allocation6], 16
        $region108: #{tpu_custom_call.1} parent=95 // pred_fallthru
          _
        // Predicated region
        $region109: #{tpu_custom_call.1} parent=95 // pred_check
          %p704 = pneg %p198
        $region110: #{tpu_custom_call.1} parent=95 // pred_check_branch
          %706 = sbr.rel (%p704) target = $region112
        $region111: #{tpu_custom_call.1} parent=95 // pred_region
          %707 = dma.done [#allocation9], 256
        $region112: #{tpu_custom_call.1} parent=95 // pred_fallthru
          _
        // Predicated region
        $region113: #{tpu_custom_call.1} parent=95 // pred_check
          %p708 = pneg %p219
        $region114: #{tpu_custom_call.1} parent=95 // pred_check_branch
          %710 = sbr.rel (%p708) target = $region116
        $region115: #{tpu_custom_call.1} parent=95 // pred_region
          %711 = dma.done [#allocation9], 256
        $region116: #{tpu_custom_call.1} parent=95 // pred_fallthru
          _
        // Predicated region
        $region117: #{tpu_custom_call.1} parent=95 // pred_check
          %p712 = pneg %p240
        $region118: #{tpu_custom_call.1} parent=95 // pred_check_branch
          %714 = sbr.rel (%p712) target = $region120
        $region119: #{tpu_custom_call.1} parent=95 // pred_region
          %715 = dma.done [#allocation12], 16
        $region120: #{tpu_custom_call.1} parent=95 // pred_fallthru
          _
        // Predicated region
        $region121: #{tpu_custom_call.1} parent=95 // pred_check
          %p716 = pneg %p261
        $region122: #{tpu_custom_call.1} parent=95 // pred_check_branch
          %718 = sbr.rel (%p716) target = $region124
        $region123: #{tpu_custom_call.1} parent=95 // pred_region
          %719 = dma.done [#allocation12], 16
        $region124: #{tpu_custom_call.1} parent=95 // pred_fallthru
          _
        // Predicated region
        $region125: #{tpu_custom_call.1} parent=95 // pred_check
          %p720 = pneg %p282
        $region126: #{tpu_custom_call.1} parent=95 // pred_check_branch
          %722 = sbr.rel (%p720) target = $region128
        $region127: #{tpu_custom_call.1} parent=95 // pred_region
          %723 = dma.done [#allocation15], 16
        $region128: #{tpu_custom_call.1} parent=95 // pred_fallthru
          _
        // Predicated region
        $region129: #{tpu_custom_call.1} parent=95 // pred_check
          %p724 = pneg %p324
        $region130: #{tpu_custom_call.1} parent=95 // pred_check_branch
          %726 = sbr.rel (%p724) target = $region132
        $region131: #{tpu_custom_call.1} parent=95 // pred_region
          %727 = dma.done [#allocation15], 16
        $region132: #{tpu_custom_call.1} parent=95 // pred_fallthru
          _
        // Predicated region
        $region133: #{tpu_custom_call.1} parent=95 // pred_check
          %p728 = pneg %p345
        $region134: #{tpu_custom_call.1} parent=95 // pred_check_branch
          %730 = sbr.rel (%p728) target = $region136
        $region135: #{tpu_custom_call.1} parent=95 // pred_region
          %731 = dma.done [#allocation18], 16
        $region136: #{tpu_custom_call.1} parent=95 // pred_fallthru
          _
        %s732 = smul.u32 2, %s46
        %p733 = scmp.lt.s32.totalorder %s732, 3
        %s734 = scalar_select %p733, %s732, 3
        %s735 = smul.addr %s734, 8
        %s736 = scalar_lea.vmem %s0, %s735
        %p737 = pneg %p67
        %p738 = pneg %p64
        %s739 = sand.u32 %s80, 1
        %s740 = scalar_lea.sflag [#allocation3], %s739
        %s741 = sand.u32 %s80, 1
        %s742 = smul.addr %s741, 2
        %s743 = scalar_lea.vmem [#allocation2], %s742
        %p744 = pneg %p93
        %p745 = pneg %p90
        %p746 = pneg %p114
        %p747 = pneg %p111
        %p748 = pneg %p135
        %p749 = pneg %p132
        %p750 = pneg %p156
        %p751 = pneg %p153
        %p752 = pneg %p177
        %p753 = pneg %p174
        %p754 = pneg %p198
        %p755 = pneg %p195
        %p756 = pneg %p219
        %p757 = pneg %p216
        %p758 = pneg %p240
        %p759 = pneg %p237
        %p760 = pneg %p261
        %p761 = pneg %p258
        %p762 = pneg %p282
        %p763 = pneg %p279
        %p764 = pneg %p303
        %p765 = pneg %p300
        %p766 = pneg %p324
        %p767 = pneg %p321
        %p768 = pneg %p345
        %p769 = pneg %p342
        %p770 = pneg %p366
        %p771 = pneg %p363
        %p772 = pneg %p387
        %p773 = pneg %p384
        %p774 = pneg %p408
        %p775 = pneg %p405
        %p776 = pneg %p429
        %p777 = pneg %p426
        %p778 = pneg %p450
        %p779 = pneg %p447
        %p780 = pneg %p476
        %p781 = pneg %p473
        %s782 = sand.u32 %s463, 1
        %s783 = scalar_lea.sflag [#allocation4], %s782
        %s784 = sand.u32 %s463, 1
        %s785 = smul.addr %s784, 16
        %s786 = scalar_lea.vmem [#allocation19], %s785
        %p787 = pneg %p502
        %p788 = pneg %p499
        %s789 = sand.u32 %s489, 1
        %s790 = scalar_lea.sflag [#allocation21], %s789
        %s791 = sand.u32 %s489, 1
        %s792 = smul.addr %s791, 16
        %s793 = scalar_lea.vmem [#allocation20], %s792
        %s794 = smul.u32 2, %s46
        %p795 = scmp.lt.s32.totalorder %s794, 3
        %s796 = scalar_select %p795, %s794, 3
        %s797 = smul.addr %s796, 8
        %s798 = scalar_lea.vmem %s0, %s797
        %s799 = smul.u32 2, %s46
        %s800 = smul.u32 2, %s46
        %s801 = smul.u32 2, %s46
        %s802 = smul.u32 2, %s46
        %v804 = vld [vmem:[%s798] sm:$0xff]
        %v805 = vld [vmem:[%s798 + $0x8] sm:$0xff]
        %v806 = vld [vmem:[%s691] sm:$0x1]
        %v807 = vld [vmem:[%s691 + $0x1] sm:$0x1]
        %v810 = vlaneseq
        %v811 = vshrl.u32 %v810, 7
        %v812 = vsub.s32 0, %v811
        %v813 = vrot.slane %v806, %v812
        %v814 = vlaneseq
        %v815 = vshrl.u32 %v814, 7
        %v816 = vsub.s32 0, %v815
        %v817 = vrot.slane %v807, %v816
        %v820 = vadd.f32 %v804, %v813
        %v821 = vadd.f32 %v805, %v817
        %v822 = vld [vmem:[%s3] sm:$0x1]
        %v823 = vld [vmem:[#allocation7] sm:$0x1]
        %vm824 = vcmask 261120
        %v825 = vsel %vm824, %v820, 0.0
        %826 = vadd.xlane.f32.xlu0 %v825
        %v827 = vpop.xlane.xlu0 %826
        %v828 = vsel %vm824, %v821, 0.0
        %829 = vadd.xlane.f32.xlu0 %v828
        %v830 = vpop.xlane.xlu0 %829
        %v831 = vrcp.pop 32.0
        %v832 = vmul.f32 %v827, %v831
        %v833 = vmul.f32 %v830, %v831
        %v834 = vsub.f32 %v820, %v832
        %v835 = vsub.f32 %v821, %v833
        %v836 = vmul.f32 %v834, %v834
        %v837 = vmul.f32 %v835, %v835
        %v838 = vsel %vm824, %v836, 0.0
        %839 = vadd.xlane.f32.xlu0 %v838
        %v840 = vpop.xlane.xlu0 %839
        %v841 = vsel %vm824, %v837, 0.0
        %842 = vadd.xlane.f32.xlu0 %v841
        %v843 = vpop.xlane.xlu0 %842
        %v844 = vmul.f32 %v840, %v831
        %v845 = vmul.f32 %v843, %v831
        %v846 = vadd.f32 %v844, 1e-05
        %v847 = vadd.f32 %v845, 1e-05
        %v848 = vrsqrt.pop %v846
        %v849 = vrsqrt.pop %v847
        %v850 = vmul.f32 %v834, %v848
        %v851 = vmul.f32 %v835, %v849
        %v853 = vlaneseq
        %v854 = vshrl.u32 %v853, 7
        %v855 = vsub.s32 0, %v854
        %v856 = vrot.slane %v822, %v855
        %v858 = vmul.f32 %v850, %v856
        %v859 = vmul.f32 %v851, %v856
        %v861 = vlaneseq
        %v862 = vshrl.u32 %v861, 7
        %v863 = vsub.s32 0, %v862
        %v864 = vrot.slane %v823, %v863
        %v866 = vadd.f32 %v858, %v864
        %v867 = vadd.f32 %v859, %v864
        %v868 = vpack.c.bf16 %v867, %v866
        %v869 = vld [vmem:[%s5] sm:$0xf]
        %v870 = vld [vmem:[%s5 + $0x4] sm:$0xf]
        %v871 = vld [vmem:[%s5 + $0x8] sm:$0xf]
        %v872 = vld [vmem:[%s5 + $0xc] sm:$0xf]
        %v873 = vld [vmem:[#allocation11] sm:$0x1]
        %v875 = vlaneseq
        %v876 = vshrl.u32 %v875, 7
        %v877 = vsub.s32 0, %v876
        %v878 = vrot.slane %v873, %v877
        %v884 = vunpack.c.l.b16 %v869
        %v885 = vunpack.c.l.b16 %v870
        %v886 = vunpack.c.l.b16 %v871
        %v887 = vunpack.c.l.b16 %v872
        %v888 = vpack.c.b16 %v885, %v884
        %v889 = vpack.c.b16 %v887, %v886
        %v893 = vsel %vm824, %v868, 0
        %895 = vmatprep.subr.bf16.mxu0 0
        %896 = vmatpush1.bf16.msra.mxu0 %v888
        %897 = vmatprep.subr.bf16.mxu0 0
        %898 = vmatpush1.bf16.msra.mxu0 %v889
        %899 = vmatprep.subr.bf16.mxu0 0
        %900 = vmatpush1.bf16.msra.mxu0 0
        %901 = vmatprep.subr.bf16.mxu0 0
        %902 = vmatpush1.bf16.msra.mxu0 0
        %903 = vmatprep.subr.bf16.mxu0 0
        %904 = vmatpush1.bf16.msra.mxu0 0
        %905 = vmatprep.subr.bf16.mxu0 0
        %906 = vmatpush1.bf16.msra.mxu0 0
        %907 = vmatprep.subr.bf16.mxu0 0
        %908 = vmatpush1.bf16.msra.mxu0 0
        %909 = vmatprep.subr.bf16.mxu0 0
        %910 = vmatpush1.bf16.msra.mxu0 0
        %911 = vmatprep.subr.bf16.mxu0 0
        %912 = vmatpush1.bf16.msra.mxu0 0
        %913 = vmatprep.subr.bf16.mxu0 0
        %914 = vmatpush1.bf16.msra.mxu0 0
        %915 = vmatprep.subr.bf16.mxu0 0
        %916 = vmatpush1.bf16.msra.mxu0 0
        %917 = vmatprep.subr.bf16.mxu0 0
        %918 = vmatpush1.bf16.msra.mxu0 0
        %919 = vmatprep.subr.bf16.mxu0 0
        %920 = vmatpush1.bf16.msra.mxu0 0
        %921 = vmatprep.subr.bf16.mxu0 0
        %922 = vmatpush1.bf16.msra.mxu0 0
        %923 = vmatprep.subr.bf16.mxu0 0
        %924 = vmatpush1.bf16.msra.mxu0 0
        %925 = vmatprep.subr.bf16.mxu0 0
        %926 = vmatpush1.bf16.msra.mxu0 0
        %927 = vmatprep.mubr.bf16.mxu0 0
        %928 = vmatmul.mubr.bf16.gmra.mrb[0].mxu0 %v893
        %v929 = vpop.f32.mrb[0].mxu0
        %v930 = vadd.f32 %v878, %v929
        %v931 = vpop.f32.mrb[0].mxu0
        %v932 = vpop.f32.mrb[0].mxu0
        %v933 = vadd.f32 %v878, %v932
        %v934 = vpop.f32.mrb[0].mxu0
        %935 = vdwg.mxu0
        %v936 = vld [vmem:[#allocation8] sm:$0xf]
        %v937 = vld [vmem:[#allocation8 + $0x4] sm:$0xf]
        %v938 = vld [vmem:[#allocation8 + $0x8] sm:$0xf]
        %v939 = vld [vmem:[#allocation8 + $0xc] sm:$0xf]
        %v940 = vld [vmem:[#allocation13] sm:$0x1]
        %v942 = vlaneseq
        %v943 = vshrl.u32 %v942, 7
        %v944 = vsub.s32 0, %v943
        %v945 = vrot.slane %v940, %v944
        %v951 = vunpack.c.l.b16 %v936
        %v952 = vunpack.c.l.b16 %v937
        %v953 = vunpack.c.l.b16 %v938
        %v954 = vunpack.c.l.b16 %v939
        %v955 = vpack.c.b16 %v952, %v951
        %v956 = vpack.c.b16 %v954, %v953
        %959 = vmatprep.subr.bf16.mxu0 0
        %960 = vmatpush1.bf16.msra.mxu0 %v955
        %961 = vmatprep.subr.bf16.mxu0 0
        %962 = vmatpush1.bf16.msra.mxu0 %v956
        %963 = vmatprep.subr.bf16.mxu0 0
        %964 = vmatpush1.bf16.msra.mxu0 0
        %965 = vmatprep.subr.bf16.mxu0 0
        %966 = vmatpush1.bf16.msra.mxu0 0
        %967 = vmatprep.subr.bf16.mxu0 0
        %968 = vmatpush1.bf16.msra.mxu0 0
        %969 = vmatprep.subr.bf16.mxu0 0
        %970 = vmatpush1.bf16.msra.mxu0 0
        %971 = vmatprep.subr.bf16.mxu0 0
        %972 = vmatpush1.bf16.msra.mxu0 0
        %973 = vmatprep.subr.bf16.mxu0 0
        %974 = vmatpush1.bf16.msra.mxu0 0
        %975 = vmatprep.subr.bf16.mxu0 0
        %976 = vmatpush1.bf16.msra.mxu0 0
        %977 = vmatprep.subr.bf16.mxu0 0
        %978 = vmatpush1.bf16.msra.mxu0 0
        %979 = vmatprep.subr.bf16.mxu0 0
        %980 = vmatpush1.bf16.msra.mxu0 0
        %981 = vmatprep.subr.bf16.mxu0 0
        %982 = vmatpush1.bf16.msra.mxu0 0
        %983 = vmatprep.subr.bf16.mxu0 0
        %984 = vmatpush1.bf16.msra.mxu0 0
        %985 = vmatprep.subr.bf16.mxu0 0
        %986 = vmatpush1.bf16.msra.mxu0 0
        %987 = vmatprep.subr.bf16.mxu0 0
        %988 = vmatpush1.bf16.msra.mxu0 0
        %989 = vmatprep.subr.bf16.mxu0 0
        %990 = vmatpush1.bf16.msra.mxu0 0
        %991 = vmatprep.mubr.bf16.mxu0 0
        %992 = vmatmul.mubr.bf16.gmra.mrb[0].mxu0 %v893
        %v993 = vpop.f32.mrb[0].mxu0
        %v994 = vadd.f32 %v945, %v993
        %v995 = vpop.f32.mrb[0].mxu0
        %v996 = vpop.f32.mrb[0].mxu0
        %v997 = vadd.f32 %v945, %v996
        %v998 = vpop.f32.mrb[0].mxu0
        %999 = vdwg.mxu0
        %v1000 = vld [vmem:[#allocation10] sm:$0xf]
        %v1001 = vld [vmem:[#allocation10 + $0x4] sm:$0xf]
        %v1002 = vld [vmem:[#allocation10 + $0x8] sm:$0xf]
        %v1003 = vld [vmem:[#allocation10 + $0xc] sm:$0xf]
        %v1004 = vld [vmem:[#allocation14] sm:$0x1]
        %v1006 = vlaneseq
        %v1007 = vshrl.u32 %v1006, 7
        %v1008 = vsub.s32 0, %v1007
        %v1009 = vrot.slane %v1004, %v1008
        %v1015 = vunpack.c.l.b16 %v1000
        %v1016 = vunpack.c.l.b16 %v1001
        %v1017 = vunpack.c.l.b16 %v1002
        %v1018 = vunpack.c.l.b16 %v1003
        %v1019 = vpack.c.b16 %v1016, %v1015
        %v1020 = vpack.c.b16 %v1018, %v1017
        %1023 = vmatprep.subr.bf16.mxu0 0
        %1024 = vmatpush1.bf16.msra.mxu0 %v1019
        %1025 = vmatprep.subr.bf16.mxu0 0
        %1026 = vmatpush1.bf16.msra.mxu0 %v1020
        %1027 = vmatprep.subr.bf16.mxu0 0
        %1028 = vmatpush1.bf16.msra.mxu0 0
        %1029 = vmatprep.subr.bf16.mxu0 0
        %1030 = vmatpush1.bf16.msra.mxu0 0
        %1031 = vmatprep.subr.bf16.mxu0 0
        %1032 = vmatpush1.bf16.msra.mxu0 0
        %1033 = vmatprep.subr.bf16.mxu0 0
        %1034 = vmatpush1.bf16.msra.mxu0 0
        %1035 = vmatprep.subr.bf16.mxu0 0
        %1036 = vmatpush1.bf16.msra.mxu0 0
        %1037 = vmatprep.subr.bf16.mxu0 0
        %1038 = vmatpush1.bf16.msra.mxu0 0
        %1039 = vmatprep.subr.bf16.mxu0 0
        %1040 = vmatpush1.bf16.msra.mxu0 0
        %1041 = vmatprep.subr.bf16.mxu0 0
        %1042 = vmatpush1.bf16.msra.mxu0 0
        %1043 = vmatprep.subr.bf16.mxu0 0
        %1044 = vmatpush1.bf16.msra.mxu0 0
        %1045 = vmatprep.subr.bf16.mxu0 0
        %1046 = vmatpush1.bf16.msra.mxu0 0
        %1047 = vmatprep.subr.bf16.mxu0 0
        %1048 = vmatpush1.bf16.msra.mxu0 0
        %1049 = vmatprep.subr.bf16.mxu0 0
        %1050 = vmatpush1.bf16.msra.mxu0 0
        %1051 = vmatprep.subr.bf16.mxu0 0
        %1052 = vmatpush1.bf16.msra.mxu0 0
        %1053 = vmatprep.subr.bf16.mxu0 0
        %1054 = vmatpush1.bf16.msra.mxu0 0
        %1055 = vmatprep.mubr.bf16.mxu0 0
        %1056 = vmatmul.mubr.bf16.gmra.mrb[0].mxu0 %v893
        %v1057 = vpop.f32.mrb[0].mxu0
        %v1058 = vadd.f32 %v1009, %v1057
        %v1059 = vpop.f32.mrb[0].mxu0
        %v1060 = vpop.f32.mrb[0].mxu0
        %v1061 = vadd.f32 %v1009, %v1060
        %v1062 = vpop.f32.mrb[0].mxu0
        %1063 = vdwg.mxu0
        %v1064 = vpack.c.bf16 %v994, %v994
        %v1065 = vpack.c.bf16 %v997, %v997
        %v1066 = vpack.c.bf16 %v1058, %v1058
        %v1067 = vpack.c.bf16 %v1061, %v1061
        %v1068 = vld [vmem:[#allocation5] sm:$0x1]
        %v1070 = vlaneseq
        %v1071 = vshrl.u32 %v1070, 7
        %v1072 = vsub.s32 0, %v1071
        %v1073 = vrot.slane %v1068, %v1072
        %v1075 = vmul.f32 %v930, %v1073
        %v1076 = vmul.f32 %v933, %v1073
        %v1077 = vpack.c.bf16 %v1075, %v1075
        %v1078 = vpack.c.bf16 %v1076, %v1076
        %v1080 = vsel %vm824, %v1077, 0
        %v1083 = vsel %vm824, %v1064, 0
        %1085 = vmatprep.subr.bf16.mxu0 0
        %1086 = vmatpush1.bf16.xpose.msra.mxu0 %v1083
        %1087 = vmatprep.subr.bf16.mxu0 0
        %1088 = vmatpush1.bf16.xpose.msra.mxu0 0
        %1089 = vmatprep.subr.bf16.mxu0 0
        %1090 = vmatpush1.bf16.xpose.msra.mxu0 0
        %1091 = vmatprep.subr.bf16.mxu0 0
        %1092 = vmatpush1.bf16.xpose.msra.mxu0 0
        %1093 = vmatprep.subr.bf16.mxu0 0
        %1094 = vmatpush1.bf16.xpose.msra.mxu0 0
        %1095 = vmatprep.subr.bf16.mxu0 0
        %1096 = vmatpush1.bf16.xpose.msra.mxu0 0
        %1097 = vmatprep.subr.bf16.mxu0 0
        %1098 = vmatpush1.bf16.xpose.msra.mxu0 0
        %1099 = vmatprep.subr.bf16.mxu0 0
        %1100 = vmatpush1.bf16.xpose.msra.mxu0 0
        %1101 = vmatprep.subr.bf16.mxu0 0
        %1102 = vmatpush1.bf16.xpose.msra.mxu0 0
        %1103 = vmatprep.subr.bf16.mxu0 0
        %1104 = vmatpush1.bf16.xpose.msra.mxu0 0
        %1105 = vmatprep.subr.bf16.mxu0 0
        %1106 = vmatpush1.bf16.xpose.msra.mxu0 0
        %1107 = vmatprep.subr.bf16.mxu0 0
        %1108 = vmatpush1.bf16.xpose.msra.mxu0 0
        %1109 = vmatprep.subr.bf16.mxu0 0
        %1110 = vmatpush1.bf16.xpose.msra.mxu0 0
        %1111 = vmatprep.subr.bf16.mxu0 0
        %1112 = vmatpush1.bf16.xpose.msra.mxu0 0
        %1113 = vmatprep.subr.bf16.mxu0 0
        %1114 = vmatpush1.bf16.xpose.msra.mxu0 0
        %1115 = vmatprep.subr.bf16.mxu0 0
        %1116 = vmatpush1.bf16.xpose.msra.mxu0 0
        %1117 = vmatprep.mubr.bf16.mxu0 0
        %1118 = vmatmul.mubr.bf16.gmra.mrb[0].mxu0 %v1080
        %v1119 = vpop.f32.mrb[0].mxu0
        %v1120 = vadd.f32 0.0, %v1119
        %v1121 = vpop.f32.mrb[0].mxu0
        %v1122 = vpop.f32.mrb[0].mxu0
        %v1123 = vpop.f32.mrb[0].mxu0
        %1124 = vdwg.mxu0
        %v1126 = vsel %vm824, %v1078, 0
        %v1129 = vsel %vm824, %v1065, 0
        %1131 = vmatprep.subr.bf16.mxu0 0
        %1132 = vmatpush1.bf16.xpose.msra.mxu0 %v1129
        %1133 = vmatprep.subr.bf16.mxu0 0
        %1134 = vmatpush1.bf16.xpose.msra.mxu0 0
        %1135 = vmatprep.subr.bf16.mxu0 0
        %1136 = vmatpush1.bf16.xpose.msra.mxu0 0
        %1137 = vmatprep.subr.bf16.mxu0 0
        %1138 = vmatpush1.bf16.xpose.msra.mxu0 0
        %1139 = vmatprep.subr.bf16.mxu0 0
        %1140 = vmatpush1.bf16.xpose.msra.mxu0 0
        %1141 = vmatprep.subr.bf16.mxu0 0
        %1142 = vmatpush1.bf16.xpose.msra.mxu0 0
        %1143 = vmatprep.subr.bf16.mxu0 0
        %1144 = vmatpush1.bf16.xpose.msra.mxu0 0
        %1145 = vmatprep.subr.bf16.mxu0 0
        %1146 = vmatpush1.bf16.xpose.msra.mxu0 0
        %1147 = vmatprep.subr.bf16.mxu0 0
        %1148 = vmatpush1.bf16.xpose.msra.mxu0 0
        %1149 = vmatprep.subr.bf16.mxu0 0
        %1150 = vmatpush1.bf16.xpose.msra.mxu0 0
        %1151 = vmatprep.subr.bf16.mxu0 0
        %1152 = vmatpush1.bf16.xpose.msra.mxu0 0
        %1153 = vmatprep.subr.bf16.mxu0 0
        %1154 = vmatpush1.bf16.xpose.msra.mxu0 0
        %1155 = vmatprep.subr.bf16.mxu0 0
        %1156 = vmatpush1.bf16.xpose.msra.mxu0 0
        %1157 = vmatprep.subr.bf16.mxu0 0
        %1158 = vmatpush1.bf16.xpose.msra.mxu0 0
        %1159 = vmatprep.subr.bf16.mxu0 0
        %1160 = vmatpush1.bf16.xpose.msra.mxu0 0
        %1161 = vmatprep.subr.bf16.mxu0 0
        %1162 = vmatpush1.bf16.xpose.msra.mxu0 0
        %1163 = vmatprep.mubr.bf16.mxu0 0
        %1164 = vmatmul.mubr.bf16.gmra.mrb[0].mxu0 %v1126
        %v1165 = vpop.f32.mrb[0].mxu0
        %v1166 = vadd.f32 0.0, %v1165
        %v1167 = vpop.f32.mrb[0].mxu0
        %v1168 = vpop.f32.mrb[0].mxu0
        %v1169 = vpop.f32.mrb[0].mxu0
        %1170 = vdwg.mxu0
        %vm1171 = vcmask 64512
        %v1172 = vsel %vm1171, %v1120, -inf
        %1173 = vmax.xlane.f32.xlu0 %v1172
        %v1174 = vpop.xlane.xlu0 %1173
        %v1175 = vsel %vm1171, %v1166, -inf
        %1176 = vmax.xlane.f32.xlu0 %v1175
        %v1177 = vpop.xlane.xlu0 %1176
        %v1178 = vsub.f32 %v1120, %v1174
        %v1179 = vsub.f32 %v1166, %v1177
        %v1180 = vmul.f32 %v1178, 1.442695
        %v1181 = vpow.pop %v1180
        %v1182 = vmul.f32 %v1179, 1.442695
        %v1183 = vpow.pop %v1182
        %v1184 = vsel %vm1171, %v1181, 0.0
        %1185 = vadd.xlane.f32.xlu0 %v1184
        %v1186 = vpop.xlane.xlu0 %1185
        %v1187 = vsel %vm1171, %v1183, 0.0
        %1188 = vadd.xlane.f32.xlu0 %v1187
        %v1189 = vpop.xlane.xlu0 %1188
        %v1190 = vrcp.pop %v1186
        %v1191 = vrcp.pop %v1189
        %v1192 = vmul.f32 %v1181, %v1190
        %v1193 = vmul.f32 %v1183, %v1191
        %v1194 = vpack.c.bf16 %v1192, %v1192
        %v1195 = vpack.c.bf16 %v1193, %v1193
        %v1197 = vsel %vm1171, %v1194, 0
        %vm1199 = vcmask 1043456
        %v1201 = vsel %vm1199, %v1066, 0
        %1203 = vmatprep.subr.bf16.mxu0 0
        %1204 = vmatpush1.bf16.msra.mxu0 %v1201
        %1205 = vmatprep.subr.bf16.mxu0 0
        %1206 = vmatpush1.bf16.msra.mxu0 0
        %1207 = vmatprep.subr.bf16.mxu0 0
        %1208 = vmatpush1.bf16.msra.mxu0 0
        %1209 = vmatprep.subr.bf16.mxu0 0
        %1210 = vmatpush1.bf16.msra.mxu0 0
        %1211 = vmatprep.subr.bf16.mxu0 0
        %1212 = vmatpush1.bf16.msra.mxu0 0
        %1213 = vmatprep.subr.bf16.mxu0 0
        %1214 = vmatpush1.bf16.msra.mxu0 0
        %1215 = vmatprep.subr.bf16.mxu0 0
        %1216 = vmatpush1.bf16.msra.mxu0 0
        %1217 = vmatprep.subr.bf16.mxu0 0
        %1218 = vmatpush1.bf16.msra.mxu0 0
        %1219 = vmatprep.subr.bf16.mxu0 0
        %1220 = vmatpush1.bf16.msra.mxu0 0
        %1221 = vmatprep.subr.bf16.mxu0 0
        %1222 = vmatpush1.bf16.msra.mxu0 0
        %1223 = vmatprep.subr.bf16.mxu0 0
        %1224 = vmatpush1.bf16.msra.mxu0 0
        %1225 = vmatprep.subr.bf16.mxu0 0
        %1226 = vmatpush1.bf16.msra.mxu0 0
        %1227 = vmatprep.subr.bf16.mxu0 0
        %1228 = vmatpush1.bf16.msra.mxu0 0
        %1229 = vmatprep.subr.bf16.mxu0 0
        %1230 = vmatpush1.bf16.msra.mxu0 0
        %1231 = vmatprep.subr.bf16.mxu0 0
        %1232 = vmatpush1.bf16.msra.mxu0 0
        %1233 = vmatprep.subr.bf16.mxu0 0
        %1234 = vmatpush1.bf16.msra.mxu0 0
        %1235 = vmatprep.mubr.bf16.mxu0 0
        %1236 = vmatmul.mubr.bf16.gmra.mrb[0].mxu0 %v1197
        %v1237 = vpop.f32.mrb[0].mxu0
        %v1238 = vadd.f32 0.0, %v1237
        %v1239 = vpop.f32.mrb[0].mxu0
        %v1240 = vpop.f32.mrb[0].mxu0
        %v1241 = vpop.f32.mrb[0].mxu0
        %1242 = vdwg.mxu0
        %v1244 = vsel %vm1171, %v1195, 0
        %v1247 = vsel %vm1199, %v1067, 0
        %1249 = vmatprep.subr.bf16.mxu0 0
        %1250 = vmatpush1.bf16.msra.mxu0 %v1247
        %1251 = vmatprep.subr.bf16.mxu0 0
        %1252 = vmatpush1.bf16.msra.mxu0 0
        %1253 = vmatprep.subr.bf16.mxu0 0
        %1254 = vmatpush1.bf16.msra.mxu0 0
        %1255 = vmatprep.subr.bf16.mxu0 0
        %1256 = vmatpush1.bf16.msra.mxu0 0
        %1257 = vmatprep.subr.bf16.mxu0 0
        %1258 = vmatpush1.bf16.msra.mxu0 0
        %1259 = vmatprep.subr.bf16.mxu0 0
        %1260 = vmatpush1.bf16.msra.mxu0 0
        %1261 = vmatprep.subr.bf16.mxu0 0
        %1262 = vmatpush1.bf16.msra.mxu0 0
        %1263 = vmatprep.subr.bf16.mxu0 0
        %1264 = vmatpush1.bf16.msra.mxu0 0
        %1265 = vmatprep.subr.bf16.mxu0 0
        %1266 = vmatpush1.bf16.msra.mxu0 0
        %1267 = vmatprep.subr.bf16.mxu0 0
        %1268 = vmatpush1.bf16.msra.mxu0 0
        %1269 = vmatprep.subr.bf16.mxu0 0
        %1270 = vmatpush1.bf16.msra.mxu0 0
        %1271 = vmatprep.subr.bf16.mxu0 0
        %1272 = vmatpush1.bf16.msra.mxu0 0
        %1273 = vmatprep.subr.bf16.mxu0 0
        %1274 = vmatpush1.bf16.msra.mxu0 0
        %1275 = vmatprep.subr.bf16.mxu0 0
        %1276 = vmatpush1.bf16.msra.mxu0 0
        %1277 = vmatprep.subr.bf16.mxu0 0
        %1278 = vmatpush1.bf16.msra.mxu0 0
        %1279 = vmatprep.subr.bf16.mxu0 0
        %1280 = vmatpush1.bf16.msra.mxu0 0
        %1281 = vmatprep.mubr.bf16.mxu0 0
        %1282 = vmatmul.mubr.bf16.gmra.mrb[0].mxu0 %v1244
        %v1283 = vpop.f32.mrb[0].mxu0
        %v1284 = vadd.f32 0.0, %v1283
        %v1285 = vpop.f32.mrb[0].mxu0
        %v1286 = vpop.f32.mrb[0].mxu0
        %v1287 = vpop.f32.mrb[0].mxu0
        %1288 = vdwg.mxu0
        %v1289 = vmul.f32 %v1238, %v1073
        %v1290 = vmul.f32 %v1284, %v1073
        %s1291 = scalar_lea.vmem [#allocation5], 1
        %v1292 = vld [vmem:[%s1291] sm:$0x1]
        %v1294 = vlaneseq
        %v1295 = vshrl.u32 %v1294, 7
        %v1296 = vsub.s32 0, %v1295
        %v1297 = vrot.slane %v1292, %v1296
        %v1299 = vmul.f32 %v930, %v1297
        %v1300 = vmul.f32 %v933, %v1297
        %v1301 = vpack.c.bf16 %v1299, %v1299
        %v1302 = vpack.c.bf16 %v1300, %v1300
        %v1304 = vsel %vm824, %v1301, 0
        %1306 = vmatprep.subr.bf16.mxu0 0
        %1307 = vmatpush1.bf16.xpose.msra.mxu0 %v1083
        %1308 = vmatprep.subr.bf16.mxu0 0
        %1309 = vmatpush1.bf16.xpose.msra.mxu0 0
        %1310 = vmatprep.subr.bf16.mxu0 0
        %1311 = vmatpush1.bf16.xpose.msra.mxu0 0
        %1312 = vmatprep.subr.bf16.mxu0 0
        %1313 = vmatpush1.bf16.xpose.msra.mxu0 0
        %1314 = vmatprep.subr.bf16.mxu0 0
        %1315 = vmatpush1.bf16.xpose.msra.mxu0 0
        %1316 = vmatprep.subr.bf16.mxu0 0
        %1317 = vmatpush1.bf16.xpose.msra.mxu0 0
        %1318 = vmatprep.subr.bf16.mxu0 0
        %1319 = vmatpush1.bf16.xpose.msra.mxu0 0
        %1320 = vmatprep.subr.bf16.mxu0 0
        %1321 = vmatpush1.bf16.xpose.msra.mxu0 0
        %1322 = vmatprep.subr.bf16.mxu0 0
        %1323 = vmatpush1.bf16.xpose.msra.mxu0 0
        %1324 = vmatprep.subr.bf16.mxu0 0
        %1325 = vmatpush1.bf16.xpose.msra.mxu0 0
        %1326 = vmatprep.subr.bf16.mxu0 0
        %1327 = vmatpush1.bf16.xpose.msra.mxu0 0
        %1328 = vmatprep.subr.bf16.mxu0 0
        %1329 = vmatpush1.bf16.xpose.msra.mxu0 0
        %1330 = vmatprep.subr.bf16.mxu0 0
        %1331 = vmatpush1.bf16.xpose.msra.mxu0 0
        %1332 = vmatprep.subr.bf16.mxu0 0
        %1333 = vmatpush1.bf16.xpose.msra.mxu0 0
        %1334 = vmatprep.subr.bf16.mxu0 0
        %1335 = vmatpush1.bf16.xpose.msra.mxu0 0
        %1336 = vmatprep.subr.bf16.mxu0 0
        %1337 = vmatpush1.bf16.xpose.msra.mxu0 0
        %1338 = vmatprep.mubr.bf16.mxu0 0
        %1339 = vmatmul.mubr.bf16.gmra.mrb[0].mxu0 %v1304
        %v1340 = vpop.f32.mrb[0].mxu0
        %v1341 = vadd.f32 0.0, %v1340
        %v1342 = vpop.f32.mrb[0].mxu0
        %v1343 = vpop.f32.mrb[0].mxu0
        %v1344 = vpop.f32.mrb[0].mxu0
        %1345 = vdwg.mxu0
        %v1347 = vsel %vm824, %v1302, 0
        %1349 = vmatprep.subr.bf16.mxu0 0
        %1350 = vmatpush1.bf16.xpose.msra.mxu0 %v1129
        %1351 = vmatprep.subr.bf16.mxu0 0
        %1352 = vmatpush1.bf16.xpose.msra.mxu0 0
        %1353 = vmatprep.subr.bf16.mxu0 0
        %1354 = vmatpush1.bf16.xpose.msra.mxu0 0
        %1355 = vmatprep.subr.bf16.mxu0 0
        %1356 = vmatpush1.bf16.xpose.msra.mxu0 0
        %1357 = vmatprep.subr.bf16.mxu0 0
        %1358 = vmatpush1.bf16.xpose.msra.mxu0 0
        %1359 = vmatprep.subr.bf16.mxu0 0
        %1360 = vmatpush1.bf16.xpose.msra.mxu0 0
        %1361 = vmatprep.subr.bf16.mxu0 0
        %1362 = vmatpush1.bf16.xpose.msra.mxu0 0
        %1363 = vmatprep.subr.bf16.mxu0 0
        %1364 = vmatpush1.bf16.xpose.msra.mxu0 0
        %1365 = vmatprep.subr.bf16.mxu0 0
        %1366 = vmatpush1.bf16.xpose.msra.mxu0 0
        %1367 = vmatprep.subr.bf16.mxu0 0
        %1368 = vmatpush1.bf16.xpose.msra.mxu0 0
        %1369 = vmatprep.subr.bf16.mxu0 0
        %1370 = vmatpush1.bf16.xpose.msra.mxu0 0
        %1371 = vmatprep.subr.bf16.mxu0 0
        %1372 = vmatpush1.bf16.xpose.msra.mxu0 0
        %1373 = vmatprep.subr.bf16.mxu0 0
        %1374 = vmatpush1.bf16.xpose.msra.mxu0 0
        %1375 = vmatprep.subr.bf16.mxu0 0
        %1376 = vmatpush1.bf16.xpose.msra.mxu0 0
        %1377 = vmatprep.subr.bf16.mxu0 0
        %1378 = vmatpush1.bf16.xpose.msra.mxu0 0
        %1379 = vmatprep.subr.bf16.mxu0 0
        %1380 = vmatpush1.bf16.xpose.msra.mxu0 0
        %1381 = vmatprep.mubr.bf16.mxu0 0
        %1382 = vmatmul.mubr.bf16.gmra.mrb[0].mxu0 %v1347
        %v1383 = vpop.f32.mrb[0].mxu0
        %v1384 = vadd.f32 0.0, %v1383
        %v1385 = vpop.f32.mrb[0].mxu0
        %v1386 = vpop.f32.mrb[0].mxu0
        %v1387 = vpop.f32.mrb[0].mxu0
        %1388 = vdwg.mxu0
        %v1389 = vsel %vm1171, %v1341, -inf
        %1390 = vmax.xlane.f32.xlu0 %v1389
        %v1391 = vpop.xlane.xlu0 %1390
        %v1392 = vsel %vm1171, %v1384, -inf
        %1393 = vmax.xlane.f32.xlu0 %v1392
        %v1394 = vpop.xlane.xlu0 %1393
        %v1395 = vsub.f32 %v1341, %v1391
        %v1396 = vsub.f32 %v1384, %v1394
        %v1397 = vmul.f32 %v1395, 1.442695
        %v1398 = vpow.pop %v1397
        %v1399 = vmul.f32 %v1396, 1.442695
        %v1400 = vpow.pop %v1399
        %v1401 = vsel %vm1171, %v1398, 0.0
        %1402 = vadd.xlane.f32.xlu0 %v1401
        %v1403 = vpop.xlane.xlu0 %1402
        %v1404 = vsel %vm1171, %v1400, 0.0
        %1405 = vadd.xlane.f32.xlu0 %v1404
        %v1406 = vpop.xlane.xlu0 %1405
        %v1407 = vrcp.pop %v1403
        %v1408 = vrcp.pop %v1406
        %v1409 = vmul.f32 %v1398, %v1407
        %v1410 = vmul.f32 %v1400, %v1408
        %v1411 = vadd.f32 %v1192, %v1409
        %v1412 = vadd.f32 %v1193, %v1410
        %v1413 = vpack.c.bf16 %v1409, %v1409
        %v1414 = vpack.c.bf16 %v1410, %v1410
        %v1416 = vsel %vm1171, %v1413, 0
        %1418 = vmatprep.subr.bf16.mxu0 0
        %1419 = vmatpush1.bf16.msra.mxu0 %v1201
        %1420 = vmatprep.subr.bf16.mxu0 0
        %1421 = vmatpush1.bf16.msra.mxu0 0
        %1422 = vmatprep.subr.bf16.mxu0 0
        %1423 = vmatpush1.bf16.msra.mxu0 0
        %1424 = vmatprep.subr.bf16.mxu0 0
        %1425 = vmatpush1.bf16.msra.mxu0 0
        %1426 = vmatprep.subr.bf16.mxu0 0
        %1427 = vmatpush1.bf16.msra.mxu0 0
        %1428 = vmatprep.subr.bf16.mxu0 0
        %1429 = vmatpush1.bf16.msra.mxu0 0
        %1430 = vmatprep.subr.bf16.mxu0 0
        %1431 = vmatpush1.bf16.msra.mxu0 0
        %1432 = vmatprep.subr.bf16.mxu0 0
        %1433 = vmatpush1.bf16.msra.mxu0 0
        %1434 = vmatprep.subr.bf16.mxu0 0
        %1435 = vmatpush1.bf16.msra.mxu0 0
        %1436 = vmatprep.subr.bf16.mxu0 0
        %1437 = vmatpush1.bf16.msra.mxu0 0
        %1438 = vmatprep.subr.bf16.mxu0 0
        %1439 = vmatpush1.bf16.msra.mxu0 0
        %1440 = vmatprep.subr.bf16.mxu0 0
        %1441 = vmatpush1.bf16.msra.mxu0 0
        %1442 = vmatprep.subr.bf16.mxu0 0
        %1443 = vmatpush1.bf16.msra.mxu0 0
        %1444 = vmatprep.subr.bf16.mxu0 0
        %1445 = vmatpush1.bf16.msra.mxu0 0
        %1446 = vmatprep.subr.bf16.mxu0 0
        %1447 = vmatpush1.bf16.msra.mxu0 0
        %1448 = vmatprep.subr.bf16.mxu0 0
        %1449 = vmatpush1.bf16.msra.mxu0 0
        %1450 = vmatprep.mubr.bf16.mxu0 0
        %1451 = vmatmul.mubr.bf16.gmra.mrb[0].mxu0 %v1416
        %v1452 = vpop.f32.mrb[0].mxu0
        %v1453 = vadd.f32 0.0, %v1452
        %v1454 = vpop.f32.mrb[0].mxu0
        %v1455 = vpop.f32.mrb[0].mxu0
        %v1456 = vpop.f32.mrb[0].mxu0
        %1457 = vdwg.mxu0
        %v1459 = vsel %vm1171, %v1414, 0
        %1461 = vmatprep.subr.bf16.mxu0 0
        %1462 = vmatpush1.bf16.msra.mxu0 %v1247
        %1463 = vmatprep.subr.bf16.mxu0 0
        %1464 = vmatpush1.bf16.msra.mxu0 0
        %1465 = vmatprep.subr.bf16.mxu0 0
        %1466 = vmatpush1.bf16.msra.mxu0 0
        %1467 = vmatprep.subr.bf16.mxu0 0
        %1468 = vmatpush1.bf16.msra.mxu0 0
        %1469 = vmatprep.subr.bf16.mxu0 0
        %1470 = vmatpush1.bf16.msra.mxu0 0
        %1471 = vmatprep.subr.bf16.mxu0 0
        %1472 = vmatpush1.bf16.msra.mxu0 0
        %1473 = vmatprep.subr.bf16.mxu0 0
        %1474 = vmatpush1.bf16.msra.mxu0 0
        %1475 = vmatprep.subr.bf16.mxu0 0
        %1476 = vmatpush1.bf16.msra.mxu0 0
        %1477 = vmatprep.subr.bf16.mxu0 0
        %1478 = vmatpush1.bf16.msra.mxu0 0
        %1479 = vmatprep.subr.bf16.mxu0 0
        %1480 = vmatpush1.bf16.msra.mxu0 0
        %1481 = vmatprep.subr.bf16.mxu0 0
        %1482 = vmatpush1.bf16.msra.mxu0 0
        %1483 = vmatprep.subr.bf16.mxu0 0
        %1484 = vmatpush1.bf16.msra.mxu0 0
        %1485 = vmatprep.subr.bf16.mxu0 0
        %1486 = vmatpush1.bf16.msra.mxu0 0
        %1487 = vmatprep.subr.bf16.mxu0 0
        %1488 = vmatpush1.bf16.msra.mxu0 0
        %1489 = vmatprep.subr.bf16.mxu0 0
        %1490 = vmatpush1.bf16.msra.mxu0 0
        %1491 = vmatprep.subr.bf16.mxu0 0
        %1492 = vmatpush1.bf16.msra.mxu0 0
        %1493 = vmatprep.mubr.bf16.mxu0 0
        %1494 = vmatmul.mubr.bf16.gmra.mrb[0].mxu0 %v1459
        %v1495 = vpop.f32.mrb[0].mxu0
        %v1496 = vadd.f32 0.0, %v1495
        %v1497 = vpop.f32.mrb[0].mxu0
        %v1498 = vpop.f32.mrb[0].mxu0
        %v1499 = vpop.f32.mrb[0].mxu0
        %1500 = vdwg.mxu0
        %v1501 = vmul.f32 %v1453, %v1297
        %v1502 = vmul.f32 %v1496, %v1297
        %v1503 = vadd.f32 %v1289, %v1501
        %v1504 = vadd.f32 %v1290, %v1502
        %s1505 = scalar_lea.vmem [#allocation5], 2
        %v1506 = vld [vmem:[%s1505] sm:$0x1]
        %v1508 = vlaneseq
        %v1509 = vshrl.u32 %v1508, 7
        %v1510 = vsub.s32 0, %v1509
        %v1511 = vrot.slane %v1506, %v1510
        %v1513 = vmul.f32 %v930, %v1511
        %v1514 = vmul.f32 %v933, %v1511
        %v1515 = vpack.c.bf16 %v1513, %v1513
        %v1516 = vpack.c.bf16 %v1514, %v1514
        %v1518 = vsel %vm824, %v1515, 0
        %1520 = vmatprep.subr.bf16.mxu0 0
        %1521 = vmatpush1.bf16.xpose.msra.mxu0 %v1083
        %1522 = vmatprep.subr.bf16.mxu0 0
        %1523 = vmatpush1.bf16.xpose.msra.mxu0 0
        %1524 = vmatprep.subr.bf16.mxu0 0
        %1525 = vmatpush1.bf16.xpose.msra.mxu0 0
        %1526 = vmatprep.subr.bf16.mxu0 0
        %1527 = vmatpush1.bf16.xpose.msra.mxu0 0
        %1528 = vmatprep.subr.bf16.mxu0 0
        %1529 = vmatpush1.bf16.xpose.msra.mxu0 0
        %1530 = vmatprep.subr.bf16.mxu0 0
        %1531 = vmatpush1.bf16.xpose.msra.mxu0 0
        %1532 = vmatprep.subr.bf16.mxu0 0
        %1533 = vmatpush1.bf16.xpose.msra.mxu0 0
        %1534 = vmatprep.subr.bf16.mxu0 0
        %1535 = vmatpush1.bf16.xpose.msra.mxu0 0
        %1536 = vmatprep.subr.bf16.mxu0 0
        %1537 = vmatpush1.bf16.xpose.msra.mxu0 0
        %1538 = vmatprep.subr.bf16.mxu0 0
        %1539 = vmatpush1.bf16.xpose.msra.mxu0 0
        %1540 = vmatprep.subr.bf16.mxu0 0
        %1541 = vmatpush1.bf16.xpose.msra.mxu0 0
        %1542 = vmatprep.subr.bf16.mxu0 0
        %1543 = vmatpush1.bf16.xpose.msra.mxu0 0
        %1544 = vmatprep.subr.bf16.mxu0 0
        %1545 = vmatpush1.bf16.xpose.msra.mxu0 0
        %1546 = vmatprep.subr.bf16.mxu0 0
        %1547 = vmatpush1.bf16.xpose.msra.mxu0 0
        %1548 = vmatprep.subr.bf16.mxu0 0
        %1549 = vmatpush1.bf16.xpose.msra.mxu0 0
        %1550 = vmatprep.subr.bf16.mxu0 0
        %1551 = vmatpush1.bf16.xpose.msra.mxu0 0
        %1552 = vmatprep.mubr.bf16.mxu0 0
        %1553 = vmatmul.mubr.bf16.gmra.mrb[0].mxu0 %v1518
        %v1554 = vpop.f32.mrb[0].mxu0
        %v1555 = vadd.f32 0.0, %v1554
        %v1556 = vpop.f32.mrb[0].mxu0
        %v1557 = vpop.f32.mrb[0].mxu0
        %v1558 = vpop.f32.mrb[0].mxu0
        %1559 = vdwg.mxu0
        %v1561 = vsel %vm824, %v1516, 0
        %1563 = vmatprep.subr.bf16.mxu0 0
        %1564 = vmatpush1.bf16.xpose.msra.mxu0 %v1129
        %1565 = vmatprep.subr.bf16.mxu0 0
        %1566 = vmatpush1.bf16.xpose.msra.mxu0 0
        %1567 = vmatprep.subr.bf16.mxu0 0
        %1568 = vmatpush1.bf16.xpose.msra.mxu0 0
        %1569 = vmatprep.subr.bf16.mxu0 0
        %1570 = vmatpush1.bf16.xpose.msra.mxu0 0
        %1571 = vmatprep.subr.bf16.mxu0 0
        %1572 = vmatpush1.bf16.xpose.msra.mxu0 0
        %1573 = vmatprep.subr.bf16.mxu0 0
        %1574 = vmatpush1.bf16.xpose.msra.mxu0 0
        %1575 = vmatprep.subr.bf16.mxu0 0
        %1576 = vmatpush1.bf16.xpose.msra.mxu0 0
        %1577 = vmatprep.subr.bf16.mxu0 0
        %1578 = vmatpush1.bf16.xpose.msra.mxu0 0
        %1579 = vmatprep.subr.bf16.mxu0 0
        %1580 = vmatpush1.bf16.xpose.msra.mxu0 0
        %1581 = vmatprep.subr.bf16.mxu0 0
        %1582 = vmatpush1.bf16.xpose.msra.mxu0 0
        %1583 = vmatprep.subr.bf16.mxu0 0
        %1584 = vmatpush1.bf16.xpose.msra.mxu0 0
        %1585 = vmatprep.subr.bf16.mxu0 0
        %1586 = vmatpush1.bf16.xpose.msra.mxu0 0
        %1587 = vmatprep.subr.bf16.mxu0 0
        %1588 = vmatpush1.bf16.xpose.msra.mxu0 0
        %1589 = vmatprep.subr.bf16.mxu0 0
        %1590 = vmatpush1.bf16.xpose.msra.mxu0 0
        %1591 = vmatprep.subr.bf16.mxu0 0
        %1592 = vmatpush1.bf16.xpose.msra.mxu0 0
        %1593 = vmatprep.subr.bf16.mxu0 0
        %1594 = vmatpush1.bf16.xpose.msra.mxu0 0
        %1595 = vmatprep.mubr.bf16.mxu0 0
        %1596 = vmatmul.mubr.bf16.gmra.mrb[0].mxu0 %v1561
        %v1597 = vpop.f32.mrb[0].mxu0
        %v1598 = vadd.f32 0.0, %v1597
        %v1599 = vpop.f32.mrb[0].mxu0
        %v1600 = vpop.f32.mrb[0].mxu0
        %v1601 = vpop.f32.mrb[0].mxu0
        %1602 = vdwg.mxu0
        %v1603 = vsel %vm1171, %v1555, -inf
        %1604 = vmax.xlane.f32.xlu0 %v1603
        %v1605 = vpop.xlane.xlu0 %1604
        %v1606 = vsel %vm1171, %v1598, -inf
        %1607 = vmax.xlane.f32.xlu0 %v1606
        %v1608 = vpop.xlane.xlu0 %1607
        %v1609 = vsub.f32 %v1555, %v1605
        %v1610 = vsub.f32 %v1598, %v1608
        %v1611 = vmul.f32 %v1609, 1.442695
        %v1612 = vpow.pop %v1611
        %v1613 = vmul.f32 %v1610, 1.442695
        %v1614 = vpow.pop %v1613
        %v1615 = vsel %vm1171, %v1612, 0.0
        %1616 = vadd.xlane.f32.xlu0 %v1615
        %v1617 = vpop.xlane.xlu0 %1616
        %v1618 = vsel %vm1171, %v1614, 0.0
        %1619 = vadd.xlane.f32.xlu0 %v1618
        %v1620 = vpop.xlane.xlu0 %1619
        %v1621 = vrcp.pop %v1617
        %v1622 = vrcp.pop %v1620
        %v1623 = vmul.f32 %v1612, %v1621
        %v1624 = vmul.f32 %v1614, %v1622
        %v1625 = vadd.f32 %v1411, %v1623
        %v1626 = vadd.f32 %v1412, %v1624
        %v1627 = vpack.c.bf16 %v1623, %v1623
        %v1628 = vpack.c.bf16 %v1624, %v1624
        %v1630 = vsel %vm1171, %v1627, 0
        %1632 = vmatprep.subr.bf16.mxu0 0
        %1633 = vmatpush1.bf16.msra.mxu0 %v1201
        %1634 = vmatprep.subr.bf16.mxu0 0
        %1635 = vmatpush1.bf16.msra.mxu0 0
        %1636 = vmatprep.subr.bf16.mxu0 0
        %1637 = vmatpush1.bf16.msra.mxu0 0
        %1638 = vmatprep.subr.bf16.mxu0 0
        %1639 = vmatpush1.bf16.msra.mxu0 0
        %1640 = vmatprep.subr.bf16.mxu0 0
        %1641 = vmatpush1.bf16.msra.mxu0 0
        %1642 = vmatprep.subr.bf16.mxu0 0
        %1643 = vmatpush1.bf16.msra.mxu0 0
        %1644 = vmatprep.subr.bf16.mxu0 0
        %1645 = vmatpush1.bf16.msra.mxu0 0
        %1646 = vmatprep.subr.bf16.mxu0 0
        %1647 = vmatpush1.bf16.msra.mxu0 0
        %1648 = vmatprep.subr.bf16.mxu0 0
        %1649 = vmatpush1.bf16.msra.mxu0 0
        %1650 = vmatprep.subr.bf16.mxu0 0
        %1651 = vmatpush1.bf16.msra.mxu0 0
        %1652 = vmatprep.subr.bf16.mxu0 0
        %1653 = vmatpush1.bf16.msra.mxu0 0
        %1654 = vmatprep.subr.bf16.mxu0 0
        %1655 = vmatpush1.bf16.msra.mxu0 0
        %1656 = vmatprep.subr.bf16.mxu0 0
        %1657 = vmatpush1.bf16.msra.mxu0 0
        %1658 = vmatprep.subr.bf16.mxu0 0
        %1659 = vmatpush1.bf16.msra.mxu0 0
        %1660 = vmatprep.subr.bf16.mxu0 0
        %1661 = vmatpush1.bf16.msra.mxu0 0
        %1662 = vmatprep.subr.bf16.mxu0 0
        %1663 = vmatpush1.bf16.msra.mxu0 0
        %1664 = vmatprep.mubr.bf16.mxu0 0
        %1665 = vmatmul.mubr.bf16.gmra.mrb[0].mxu0 %v1630
        %v1666 = vpop.f32.mrb[0].mxu0
        %v1667 = vadd.f32 0.0, %v1666
        %v1668 = vpop.f32.mrb[0].mxu0
        %v1669 = vpop.f32.mrb[0].mxu0
        %v1670 = vpop.f32.mrb[0].mxu0
        %1671 = vdwg.mxu0
        %v1673 = vsel %vm1171, %v1628, 0
        %1675 = vmatprep.subr.bf16.mxu0 0
        %1676 = vmatpush1.bf16.msra.mxu0 %v1247
        %1677 = vmatprep.subr.bf16.mxu0 0
        %1678 = vmatpush1.bf16.msra.mxu0 0
        %1679 = vmatprep.subr.bf16.mxu0 0
        %1680 = vmatpush1.bf16.msra.mxu0 0
        %1681 = vmatprep.subr.bf16.mxu0 0
        %1682 = vmatpush1.bf16.msra.mxu0 0
        %1683 = vmatprep.subr.bf16.mxu0 0
        %1684 = vmatpush1.bf16.msra.mxu0 0
        %1685 = vmatprep.subr.bf16.mxu0 0
        %1686 = vmatpush1.bf16.msra.mxu0 0
        %1687 = vmatprep.subr.bf16.mxu0 0
        %1688 = vmatpush1.bf16.msra.mxu0 0
        %1689 = vmatprep.subr.bf16.mxu0 0
        %1690 = vmatpush1.bf16.msra.mxu0 0
        %1691 = vmatprep.subr.bf16.mxu0 0
        %1692 = vmatpush1.bf16.msra.mxu0 0
        %1693 = vmatprep.subr.bf16.mxu0 0
        %1694 = vmatpush1.bf16.msra.mxu0 0
        %1695 = vmatprep.subr.bf16.mxu0 0
        %1696 = vmatpush1.bf16.msra.mxu0 0
        %1697 = vmatprep.subr.bf16.mxu0 0
        %1698 = vmatpush1.bf16.msra.mxu0 0
        %1699 = vmatprep.subr.bf16.mxu0 0
        %1700 = vmatpush1.bf16.msra.mxu0 0
        %1701 = vmatprep.subr.bf16.mxu0 0
        %1702 = vmatpush1.bf16.msra.mxu0 0
        %1703 = vmatprep.subr.bf16.mxu0 0
        %1704 = vmatpush1.bf16.msra.mxu0 0
        %1705 = vmatprep.subr.bf16.mxu0 0
        %1706 = vmatpush1.bf16.msra.mxu0 0
        %1707 = vmatprep.mubr.bf16.mxu0 0
        %1708 = vmatmul.mubr.bf16.gmra.mrb[0].mxu0 %v1673
        %v1709 = vpop.f32.mrb[0].mxu0
        %v1710 = vadd.f32 0.0, %v1709
        %v1711 = vpop.f32.mrb[0].mxu0
        %v1712 = vpop.f32.mrb[0].mxu0
        %v1713 = vpop.f32.mrb[0].mxu0
        %1714 = vdwg.mxu0
        %v1715 = vmul.f32 %v1667, %v1511
        %v1716 = vmul.f32 %v1710, %v1511
        %v1717 = vadd.f32 %v1503, %v1715
        %v1718 = vadd.f32 %v1504, %v1716
        %s1719 = scalar_lea.vmem [#allocation5], 3
        %v1720 = vld [vmem:[%s1719] sm:$0x1]
        %v1722 = vlaneseq
        %v1723 = vshrl.u32 %v1722, 7
        %v1724 = vsub.s32 0, %v1723
        %v1725 = vrot.slane %v1720, %v1724
        %v1727 = vmul.f32 %v930, %v1725
        %v1728 = vmul.f32 %v933, %v1725
        %v1729 = vpack.c.bf16 %v1727, %v1727
        %v1730 = vpack.c.bf16 %v1728, %v1728
        %v1732 = vsel %vm824, %v1729, 0
        %1734 = vmatprep.subr.bf16.mxu0 0
        %1735 = vmatpush1.bf16.xpose.msra.mxu0 %v1083
        %1736 = vmatprep.subr.bf16.mxu0 0
        %1737 = vmatpush1.bf16.xpose.msra.mxu0 0
        %1738 = vmatprep.subr.bf16.mxu0 0
        %1739 = vmatpush1.bf16.xpose.msra.mxu0 0
        %1740 = vmatprep.subr.bf16.mxu0 0
        %1741 = vmatpush1.bf16.xpose.msra.mxu0 0
        %1742 = vmatprep.subr.bf16.mxu0 0
        %1743 = vmatpush1.bf16.xpose.msra.mxu0 0
        %1744 = vmatprep.subr.bf16.mxu0 0
        %1745 = vmatpush1.bf16.xpose.msra.mxu0 0
        %1746 = vmatprep.subr.bf16.mxu0 0
        %1747 = vmatpush1.bf16.xpose.msra.mxu0 0
        %1748 = vmatprep.subr.bf16.mxu0 0
        %1749 = vmatpush1.bf16.xpose.msra.mxu0 0
        %1750 = vmatprep.subr.bf16.mxu0 0
        %1751 = vmatpush1.bf16.xpose.msra.mxu0 0
        %1752 = vmatprep.subr.bf16.mxu0 0
        %1753 = vmatpush1.bf16.xpose.msra.mxu0 0
        %1754 = vmatprep.subr.bf16.mxu0 0
        %1755 = vmatpush1.bf16.xpose.msra.mxu0 0
        %1756 = vmatprep.subr.bf16.mxu0 0
        %1757 = vmatpush1.bf16.xpose.msra.mxu0 0
        %1758 = vmatprep.subr.bf16.mxu0 0
        %1759 = vmatpush1.bf16.xpose.msra.mxu0 0
        %1760 = vmatprep.subr.bf16.mxu0 0
        %1761 = vmatpush1.bf16.xpose.msra.mxu0 0
        %1762 = vmatprep.subr.bf16.mxu0 0
        %1763 = vmatpush1.bf16.xpose.msra.mxu0 0
        %1764 = vmatprep.subr.bf16.mxu0 0
        %1765 = vmatpush1.bf16.xpose.msra.mxu0 0
        %1766 = vmatprep.mubr.bf16.mxu0 0
        %1767 = vmatmul.mubr.bf16.gmra.mrb[0].mxu0 %v1732
        %v1768 = vpop.f32.mrb[0].mxu0
        %v1769 = vadd.f32 0.0, %v1768
        %v1770 = vpop.f32.mrb[0].mxu0
        %v1771 = vpop.f32.mrb[0].mxu0
        %v1772 = vpop.f32.mrb[0].mxu0
        %1773 = vdwg.mxu0
        %v1775 = vsel %vm824, %v1730, 0
        %1777 = vmatprep.subr.bf16.mxu0 0
        %1778 = vmatpush1.bf16.xpose.msra.mxu0 %v1129
        %1779 = vmatprep.subr.bf16.mxu0 0
        %1780 = vmatpush1.bf16.xpose.msra.mxu0 0
        %1781 = vmatprep.subr.bf16.mxu0 0
        %1782 = vmatpush1.bf16.xpose.msra.mxu0 0
        %1783 = vmatprep.subr.bf16.mxu0 0
        %1784 = vmatpush1.bf16.xpose.msra.mxu0 0
        %1785 = vmatprep.subr.bf16.mxu0 0
        %1786 = vmatpush1.bf16.xpose.msra.mxu0 0
        %1787 = vmatprep.subr.bf16.mxu0 0
        %1788 = vmatpush1.bf16.xpose.msra.mxu0 0
        %1789 = vmatprep.subr.bf16.mxu0 0
        %1790 = vmatpush1.bf16.xpose.msra.mxu0 0
        %1791 = vmatprep.subr.bf16.mxu0 0
        %1792 = vmatpush1.bf16.xpose.msra.mxu0 0
        %1793 = vmatprep.subr.bf16.mxu0 0
        %1794 = vmatpush1.bf16.xpose.msra.mxu0 0
        %1795 = vmatprep.subr.bf16.mxu0 0
        %1796 = vmatpush1.bf16.xpose.msra.mxu0 0
        %1797 = vmatprep.subr.bf16.mxu0 0
        %1798 = vmatpush1.bf16.xpose.msra.mxu0 0
        %1799 = vmatprep.subr.bf16.mxu0 0
        %1800 = vmatpush1.bf16.xpose.msra.mxu0 0
        %1801 = vmatprep.subr.bf16.mxu0 0
        %1802 = vmatpush1.bf16.xpose.msra.mxu0 0
        %1803 = vmatprep.subr.bf16.mxu0 0
        %1804 = vmatpush1.bf16.xpose.msra.mxu0 0
        %1805 = vmatprep.subr.bf16.mxu0 0
        %1806 = vmatpush1.bf16.xpose.msra.mxu0 0
        %1807 = vmatprep.subr.bf16.mxu0 0
        %1808 = vmatpush1.bf16.xpose.msra.mxu0 0
        %1809 = vmatprep.mubr.bf16.mxu0 0
        %1810 = vmatmul.mubr.bf16.gmra.mrb[0].mxu0 %v1775
        %v1811 = vpop.f32.mrb[0].mxu0
        %v1812 = vadd.f32 0.0, %v1811
        %v1813 = vpop.f32.mrb[0].mxu0
        %v1814 = vpop.f32.mrb[0].mxu0
        %v1815 = vpop.f32.mrb[0].mxu0
        %1816 = vdwg.mxu0
        %v1817 = vsel %vm1171, %v1769, -inf
        %1818 = vmax.xlane.f32.xlu0 %v1817
        %v1819 = vpop.xlane.xlu0 %1818
        %v1820 = vsel %vm1171, %v1812, -inf
        %1821 = vmax.xlane.f32.xlu0 %v1820
        %v1822 = vpop.xlane.xlu0 %1821
        %v1823 = vsub.f32 %v1769, %v1819
        %v1824 = vsub.f32 %v1812, %v1822
        %v1825 = vmul.f32 %v1823, 1.442695
        %v1826 = vpow.pop %v1825
        %v1827 = vmul.f32 %v1824, 1.442695
        %v1828 = vpow.pop %v1827
        %v1829 = vsel %vm1171, %v1826, 0.0
        %1830 = vadd.xlane.f32.xlu0 %v1829
        %v1831 = vpop.xlane.xlu0 %1830
        %v1832 = vsel %vm1171, %v1828, 0.0
        %1833 = vadd.xlane.f32.xlu0 %v1832
        %v1834 = vpop.xlane.xlu0 %1833
        %v1835 = vrcp.pop %v1831
        %v1836 = vrcp.pop %v1834
        %v1837 = vmul.f32 %v1826, %v1835
        %v1838 = vmul.f32 %v1828, %v1836
        %v1839 = vadd.f32 %v1625, %v1837
        %v1840 = vadd.f32 %v1626, %v1838
        %v1841 = vpack.c.bf16 %v1837, %v1837
        %v1842 = vpack.c.bf16 %v1838, %v1838
        %v1844 = vsel %vm1171, %v1841, 0
        %1846 = vmatprep.subr.bf16.mxu0 0
        %1847 = vmatpush1.bf16.msra.mxu0 %v1201
        %1848 = vmatprep.subr.bf16.mxu0 0
        %1849 = vmatpush1.bf16.msra.mxu0 0
        %1850 = vmatprep.subr.bf16.mxu0 0
        %1851 = vmatpush1.bf16.msra.mxu0 0
        %1852 = vmatprep.subr.bf16.mxu0 0
        %1853 = vmatpush1.bf16.msra.mxu0 0
        %1854 = vmatprep.subr.bf16.mxu0 0
        %1855 = vmatpush1.bf16.msra.mxu0 0
        %1856 = vmatprep.subr.bf16.mxu0 0
        %1857 = vmatpush1.bf16.msra.mxu0 0
        %1858 = vmatprep.subr.bf16.mxu0 0
        %1859 = vmatpush1.bf16.msra.mxu0 0
        %1860 = vmatprep.subr.bf16.mxu0 0
        %1861 = vmatpush1.bf16.msra.mxu0 0
        %1862 = vmatprep.subr.bf16.mxu0 0
        %1863 = vmatpush1.bf16.msra.mxu0 0
        %1864 = vmatprep.subr.bf16.mxu0 0
        %1865 = vmatpush1.bf16.msra.mxu0 0
        %1866 = vmatprep.subr.bf16.mxu0 0
        %1867 = vmatpush1.bf16.msra.mxu0 0
        %1868 = vmatprep.subr.bf16.mxu0 0
        %1869 = vmatpush1.bf16.msra.mxu0 0
        %1870 = vmatprep.subr.bf16.mxu0 0
        %1871 = vmatpush1.bf16.msra.mxu0 0
        %1872 = vmatprep.subr.bf16.mxu0 0
        %1873 = vmatpush1.bf16.msra.mxu0 0
        %1874 = vmatprep.subr.bf16.mxu0 0
        %1875 = vmatpush1.bf16.msra.mxu0 0
        %1876 = vmatprep.subr.bf16.mxu0 0
        %1877 = vmatpush1.bf16.msra.mxu0 0
        %1878 = vmatprep.mubr.bf16.mxu0 0
        %1879 = vmatmul.mubr.bf16.gmra.mrb[0].mxu0 %v1844
        %v1880 = vpop.f32.mrb[0].mxu0
        %v1881 = vadd.f32 0.0, %v1880
        %v1882 = vpop.f32.mrb[0].mxu0
        %v1883 = vpop.f32.mrb[0].mxu0
        %v1884 = vpop.f32.mrb[0].mxu0
        %1885 = vdwg.mxu0
        %v1887 = vsel %vm1171, %v1842, 0
        %1889 = vmatprep.subr.bf16.mxu0 0
        %1890 = vmatpush1.bf16.msra.mxu0 %v1247
        %1891 = vmatprep.subr.bf16.mxu0 0
        %1892 = vmatpush1.bf16.msra.mxu0 0
        %1893 = vmatprep.subr.bf16.mxu0 0
        %1894 = vmatpush1.bf16.msra.mxu0 0
        %1895 = vmatprep.subr.bf16.mxu0 0
        %1896 = vmatpush1.bf16.msra.mxu0 0
        %1897 = vmatprep.subr.bf16.mxu0 0
        %1898 = vmatpush1.bf16.msra.mxu0 0
        %1899 = vmatprep.subr.bf16.mxu0 0
        %1900 = vmatpush1.bf16.msra.mxu0 0
        %1901 = vmatprep.subr.bf16.mxu0 0
        %1902 = vmatpush1.bf16.msra.mxu0 0
        %1903 = vmatprep.subr.bf16.mxu0 0
        %1904 = vmatpush1.bf16.msra.mxu0 0
        %1905 = vmatprep.subr.bf16.mxu0 0
        %1906 = vmatpush1.bf16.msra.mxu0 0
        %1907 = vmatprep.subr.bf16.mxu0 0
        %1908 = vmatpush1.bf16.msra.mxu0 0
        %1909 = vmatprep.subr.bf16.mxu0 0
        %1910 = vmatpush1.bf16.msra.mxu0 0
        %1911 = vmatprep.subr.bf16.mxu0 0
        %1912 = vmatpush1.bf16.msra.mxu0 0
        %1913 = vmatprep.subr.bf16.mxu0 0
        %1914 = vmatpush1.bf16.msra.mxu0 0
        %1915 = vmatprep.subr.bf16.mxu0 0
        %1916 = vmatpush1.bf16.msra.mxu0 0
        %1917 = vmatprep.subr.bf16.mxu0 0
        %1918 = vmatpush1.bf16.msra.mxu0 0
        %1919 = vmatprep.subr.bf16.mxu0 0
        %1920 = vmatpush1.bf16.msra.mxu0 0
        %1921 = vmatprep.mubr.bf16.mxu0 0
        %1922 = vmatmul.mubr.bf16.gmra.mrb[0].mxu0 %v1887
        %v1923 = vpop.f32.mrb[0].mxu0
        %v1924 = vadd.f32 0.0, %v1923
        %v1925 = vpop.f32.mrb[0].mxu0
        %v1926 = vpop.f32.mrb[0].mxu0
        %v1927 = vpop.f32.mrb[0].mxu0
        %1928 = vdwg.mxu0
        %v1929 = vmul.f32 %v1881, %v1725
        %v1930 = vmul.f32 %v1924, %v1725
        %v1931 = vadd.f32 %v1717, %v1929
        %v1932 = vadd.f32 %v1718, %v1930
        %v1933 = vmul.f32 %v1839, 0.25
        %v1934 = vmul.f32 %v1840, 0.25
        %1935 = vst.msk [vmem:[%s793] sm:$0xff] %vm1171, %v1933
        %1936 = vst.msk [vmem:[%s793 + $0x8] sm:$0xff] %vm1171, %v1934
        %v1937 = vpack.c.bf16 %v1932, %v1931
        %v1938 = vld [vmem:[%s11] sm:$0xf]
        %v1939 = vld [vmem:[%s11 + $0x4] sm:$0xf]
        %v1940 = vld [vmem:[%s11 + $0x8] sm:$0xf]
        %v1941 = vld [vmem:[%s11 + $0xc] sm:$0xf]
        %v1942 = vld [vmem:[#allocation16] sm:$0x1]
        %v1944 = vlaneseq
        %v1945 = vshrl.u32 %v1944, 7
        %v1946 = vsub.s32 0, %v1945
        %v1947 = vrot.slane %v1942, %v1946
        %v1953 = vunpack.c.l.b16 %v1938
        %v1954 = vunpack.c.l.b16 %v1939
        %v1955 = vunpack.c.l.b16 %v1940
        %v1956 = vunpack.c.l.b16 %v1941
        %v1957 = vpack.c.b16 %v1954, %v1953
        %v1958 = vpack.c.b16 %v1956, %v1955
        %v1962 = vsel %vm824, %v1937, 0
        %1964 = vmatprep.subr.bf16.mxu0 0
        %1965 = vmatpush1.bf16.msra.mxu0 %v1957
        %1966 = vmatprep.subr.bf16.mxu0 0
        %1967 = vmatpush1.bf16.msra.mxu0 %v1958
        %1968 = vmatprep.subr.bf16.mxu0 0
        %1969 = vmatpush1.bf16.msra.mxu0 0
        %1970 = vmatprep.subr.bf16.mxu0 0
        %1971 = vmatpush1.bf16.msra.mxu0 0
        %1972 = vmatprep.subr.bf16.mxu0 0
        %1973 = vmatpush1.bf16.msra.mxu0 0
        %1974 = vmatprep.subr.bf16.mxu0 0
        %1975 = vmatpush1.bf16.msra.mxu0 0
        %1976 = vmatprep.subr.bf16.mxu0 0
        %1977 = vmatpush1.bf16.msra.mxu0 0
        %1978 = vmatprep.subr.bf16.mxu0 0
        %1979 = vmatpush1.bf16.msra.mxu0 0
        %1980 = vmatprep.subr.bf16.mxu0 0
        %1981 = vmatpush1.bf16.msra.mxu0 0
        %1982 = vmatprep.subr.bf16.mxu0 0
        %1983 = vmatpush1.bf16.msra.mxu0 0
        %1984 = vmatprep.subr.bf16.mxu0 0
        %1985 = vmatpush1.bf16.msra.mxu0 0
        %1986 = vmatprep.subr.bf16.mxu0 0
        %1987 = vmatpush1.bf16.msra.mxu0 0
        %1988 = vmatprep.subr.bf16.mxu0 0
        %1989 = vmatpush1.bf16.msra.mxu0 0
        %1990 = vmatprep.subr.bf16.mxu0 0
        %1991 = vmatpush1.bf16.msra.mxu0 0
        %1992 = vmatprep.subr.bf16.mxu0 0
        %1993 = vmatpush1.bf16.msra.mxu0 0
        %1994 = vmatprep.subr.bf16.mxu0 0
        %1995 = vmatpush1.bf16.msra.mxu0 0
        %1996 = vmatprep.mubr.bf16.mxu0 0
        %1997 = vmatmul.mubr.bf16.gmra.mrb[0].mxu0 %v1962
        %v1998 = vpop.f32.mrb[0].mxu0
        %v1999 = vadd.f32 %v1947, %v1998
        %v2000 = vpop.f32.mrb[0].mxu0
        %v2001 = vpop.f32.mrb[0].mxu0
        %v2002 = vadd.f32 %v1947, %v2001
        %v2003 = vpop.f32.mrb[0].mxu0
        %2004 = vdwg.mxu0
        %v2005 = vadd.f32 %v866, %v1999
        %v2006 = vadd.f32 %v867, %v2002
        %v2007 = vld [vmem:[#allocation17] sm:$0x1]
        %v2008 = vld [vmem:[%s14] sm:$0x1]
        %v2009 = vsel %vm824, %v2005, 0.0
        %2010 = vadd.xlane.f32.xlu0 %v2009
        %v2011 = vpop.xlane.xlu0 %2010
        %v2012 = vsel %vm824, %v2006, 0.0
        %2013 = vadd.xlane.f32.xlu0 %v2012
        %v2014 = vpop.xlane.xlu0 %2013
        %v2015 = vmul.f32 %v2011, %v831
        %v2016 = vmul.f32 %v2014, %v831
        %v2017 = vsub.f32 %v2005, %v2015
        %v2018 = vsub.f32 %v2006, %v2016
        %v2019 = vmul.f32 %v2017, %v2017
        %v2020 = vmul.f32 %v2018, %v2018
        %v2021 = vsel %vm824, %v2019, 0.0
        %2022 = vadd.xlane.f32.xlu0 %v2021
        %v2023 = vpop.xlane.xlu0 %2022
        %v2024 = vsel %vm824, %v2020, 0.0
        %2025 = vadd.xlane.f32.xlu0 %v2024
        %v2026 = vpop.xlane.xlu0 %2025
        %v2027 = vmul.f32 %v2023, %v831
        %v2028 = vmul.f32 %v2026, %v831
        %v2029 = vadd.f32 %v2027, 1e-05
        %v2030 = vadd.f32 %v2028, 1e-05
        %v2031 = vrsqrt.pop %v2029
        %v2032 = vrsqrt.pop %v2030
        %v2033 = vmul.f32 %v2017, %v2031
        %v2034 = vmul.f32 %v2018, %v2032
        %v2036 = vlaneseq
        %v2037 = vshrl.u32 %v2036, 7
        %v2038 = vsub.s32 0, %v2037
        %v2039 = vrot.slane %v2007, %v2038
        %v2041 = vmul.f32 %v2033, %v2039
        %v2042 = vmul.f32 %v2034, %v2039
        %v2044 = vlaneseq
        %v2045 = vshrl.u32 %v2044, 7
        %v2046 = vsub.s32 0, %v2045
        %v2047 = vrot.slane %v2008, %v2046
        %v2049 = vadd.f32 %v2041, %v2047
        %v2050 = vadd.f32 %v2042, %v2047
        %v2051 = vpack.c.bf16 %v2050, %v2049
        %v2052 = vld [vmem:[%s15] sm:$0xf]
        %v2053 = vld [vmem:[%s15 + $0x4] sm:$0xf]
        %v2054 = vld [vmem:[%s15 + $0x8] sm:$0xf]
        %v2055 = vld [vmem:[%s15 + $0xc] sm:$0xf]
        %v2056 = vld [vmem:[%s16] sm:$0x1]
        %v2058 = vlaneseq
        %v2059 = vshrl.u32 %v2058, 7
        %v2060 = vsub.s32 0, %v2059
        %v2061 = vrot.slane %v2056, %v2060
        %v2067 = vunpack.c.l.b16 %v2052
        %v2068 = vunpack.c.l.b16 %v2053
        %v2069 = vunpack.c.l.b16 %v2054
        %v2070 = vunpack.c.l.b16 %v2055
        %v2071 = vpack.c.b16 %v2068, %v2067
        %v2072 = vpack.c.b16 %v2070, %v2069
        %v2076 = vsel %vm824, %v2051, 0
        %2078 = vmatprep.subr.bf16.mxu0 0
        %2079 = vmatpush1.bf16.msra.mxu0 %v2071
        %2080 = vmatprep.subr.bf16.mxu0 0
        %2081 = vmatpush1.bf16.msra.mxu0 %v2072
        %2082 = vmatprep.subr.bf16.mxu0 0
        %2083 = vmatpush1.bf16.msra.mxu0 0
        %2084 = vmatprep.subr.bf16.mxu0 0
        %2085 = vmatpush1.bf16.msra.mxu0 0
        %2086 = vmatprep.subr.bf16.mxu0 0
        %2087 = vmatpush1.bf16.msra.mxu0 0
        %2088 = vmatprep.subr.bf16.mxu0 0
        %2089 = vmatpush1.bf16.msra.mxu0 0
        %2090 = vmatprep.subr.bf16.mxu0 0
        %2091 = vmatpush1.bf16.msra.mxu0 0
        %2092 = vmatprep.subr.bf16.mxu0 0
        %2093 = vmatpush1.bf16.msra.mxu0 0
        %2094 = vmatprep.subr.bf16.mxu0 0
        %2095 = vmatpush1.bf16.msra.mxu0 0
        %2096 = vmatprep.subr.bf16.mxu0 0
        %2097 = vmatpush1.bf16.msra.mxu0 0
        %2098 = vmatprep.subr.bf16.mxu0 0
        %2099 = vmatpush1.bf16.msra.mxu0 0
        %2100 = vmatprep.subr.bf16.mxu0 0
        %2101 = vmatpush1.bf16.msra.mxu0 0
        %2102 = vmatprep.subr.bf16.mxu0 0
        %2103 = vmatpush1.bf16.msra.mxu0 0
        %2104 = vmatprep.subr.bf16.mxu0 0
        %2105 = vmatpush1.bf16.msra.mxu0 0
        %2106 = vmatprep.subr.bf16.mxu0 0
        %2107 = vmatpush1.bf16.msra.mxu0 0
        %2108 = vmatprep.subr.bf16.mxu0 0
        %2109 = vmatpush1.bf16.msra.mxu0 0
        %2110 = vmatprep.mubr.bf16.mxu0 0
        %2111 = vmatmul.mubr.bf16.gmra.mrb[0].mxu0 %v2076
        %v2112 = vpop.f32.mrb[0].mxu0
        %v2113 = vadd.f32 %v2061, %v2112
        %v2114 = vpop.f32.mrb[0].mxu0
        %v2115 = vpop.f32.mrb[0].mxu0
        %v2116 = vadd.f32 %v2061, %v2115
        %v2117 = vpop.f32.mrb[0].mxu0
        %2118 = vdwg.mxu0
        %v2119 = vmul.f32 %v2113, 0.5
        %v2120 = vmul.f32 %v2116, 0.5
        %v2121 = vmul.f32 %v2113, 0.70710677
        %v2122 = vmul.f32 %v2116, 0.70710677
        %vm2123 = vcmp.ge.f32.partialorder %v2121, 0.0
        %vm2124 = vcmp.ge.f32.partialorder %v2122, 0.0
        %v2125 = vsel %vm2123, 1.0, -1.0
        %v2126 = vsel %vm2124, 1.0, -1.0
        %v2127 = vand.u32 2147483647, %v2121
        %v2128 = vand.u32 2147483647, %v2122
        %v2129 = vmul.f32 %v2127, 0.3275911
        %v2130 = vmul.f32 %v2128, 0.3275911
        %v2131 = vadd.f32 %v2129, 1.0
        %v2132 = vadd.f32 %v2130, 1.0
        %v2133 = vrcp.pop %v2131
        %v2134 = vmul.f32 1.0, %v2133
        %v2135 = vrcp.pop %v2132
        %v2136 = vmul.f32 1.0, %v2135
        %v2137 = vmul.f32 %v2134, 1.0614054
        %v2138 = vmul.f32 %v2136, 1.0614054
        %v2139 = vadd.f32 %v2137, -1.4531521
        %v2140 = vadd.f32 %v2138, -1.4531521
        %v2141 = vmul.f32 %v2139, %v2134
        %v2142 = vmul.f32 %v2140, %v2136
        %v2143 = vadd.f32 %v2141, 1.4214138
        %v2144 = vadd.f32 %v2142, 1.4214138
        %v2145 = vmul.f32 %v2143, %v2134
        %v2146 = vmul.f32 %v2144, %v2136
        %v2147 = vadd.f32 %v2145, -0.28449672
        %v2148 = vadd.f32 %v2146, -0.28449672
        %v2149 = vmul.f32 %v2147, %v2134
        %v2150 = vmul.f32 %v2148, %v2136
        %v2151 = vadd.f32 %v2149, 0.2548296
        %v2152 = vadd.f32 %v2150, 0.2548296
        %v2153 = vmul.f32 %v2151, %v2134
        %v2154 = vmul.f32 %v2152, %v2136
        %v2155 = vsub.f32 0.0, %v2127
        %v2156 = vsub.f32 0.0, %v2128
        %v2157 = vmul.f32 %v2155, %v2127
        %v2158 = vmul.f32 %v2156, %v2128
        %v2159 = vmul.f32 %v2157, 1.442695
        %v2160 = vpow.pop %v2159
        %v2161 = vmul.f32 %v2158, 1.442695
        %v2162 = vpow.pop %v2161
        %v2163 = vmul.f32 %v2153, %v2160
        %v2164 = vmul.f32 %v2154, %v2162
        %v2165 = vsub.f32 1.0, %v2163
        %v2166 = vsub.f32 1.0, %v2164
        %v2167 = vmul.f32 %v2125, %v2165
        %v2168 = vmul.f32 %v2126, %v2166
        %v2169 = vadd.f32 %v2167, 1.0
        %v2170 = vadd.f32 %v2168, 1.0
        %v2171 = vmul.f32 %v2119, %v2169
        %v2172 = vmul.f32 %v2120, %v2170
        %v2173 = vpack.c.bf16 %v2172, %v2171
        %v2174 = vld [vmem:[%s17] sm:$0xf]
        %v2175 = vld [vmem:[%s17 + $0x4] sm:$0xf]
        %v2176 = vld [vmem:[%s17 + $0x8] sm:$0xf]
        %v2177 = vld [vmem:[%s17 + $0xc] sm:$0xf]
        %v2178 = vld [vmem:[%s17 + $0x10] sm:$0xf]
        %v2179 = vld [vmem:[%s17 + $0x14] sm:$0xf]
        %v2180 = vld [vmem:[%s17 + $0x18] sm:$0xf]
        %v2181 = vld [vmem:[%s17 + $0x1c] sm:$0xf]
        %v2182 = vld [vmem:[%s18] sm:$0x1]
        %v2184 = vlaneseq
        %v2185 = vshrl.u32 %v2184, 7
        %v2186 = vsub.s32 0, %v2185
        %v2187 = vrot.slane %v2182, %v2186
        %v2197 = vunpack.c.l.b16 %v2174
        %v2198 = vunpack.c.l.b16 %v2175
        %v2199 = vunpack.c.l.b16 %v2176
        %v2200 = vunpack.c.l.b16 %v2177
        %v2201 = vunpack.c.l.b16 %v2178
        %v2202 = vunpack.c.l.b16 %v2179
        %v2203 = vunpack.c.l.b16 %v2180
        %v2204 = vunpack.c.l.b16 %v2181
        %v2205 = vpack.c.b16 %v2198, %v2197
        %v2206 = vpack.c.b16 %v2200, %v2199
        %v2207 = vpack.c.b16 %v2202, %v2201
        %v2208 = vpack.c.b16 %v2204, %v2203
        %vm2213 = vcmask 523264
        %v2215 = vsel %vm2213, %v2173, 0
        %2217 = vmatprep.subr.bf16.mxu0 0
        %2218 = vmatpush1.bf16.msra.mxu0 %v2205
        %2219 = vmatprep.subr.bf16.mxu0 0
        %2220 = vmatpush1.bf16.msra.mxu0 %v2206
        %2221 = vmatprep.subr.bf16.mxu0 0
        %2222 = vmatpush1.bf16.msra.mxu0 %v2207
        %2223 = vmatprep.subr.bf16.mxu0 0
        %2224 = vmatpush1.bf16.msra.mxu0 %v2208
        %2225 = vmatprep.subr.bf16.mxu0 0
        %2226 = vmatpush1.bf16.msra.mxu0 0
        %2227 = vmatprep.subr.bf16.mxu0 0
        %2228 = vmatpush1.bf16.msra.mxu0 0
        %2229 = vmatprep.subr.bf16.mxu0 0
        %2230 = vmatpush1.bf16.msra.mxu0 0
        %2231 = vmatprep.subr.bf16.mxu0 0
        %2232 = vmatpush1.bf16.msra.mxu0 0
        %2233 = vmatprep.subr.bf16.mxu0 0
        %2234 = vmatpush1.bf16.msra.mxu0 0
        %2235 = vmatprep.subr.bf16.mxu0 0
        %2236 = vmatpush1.bf16.msra.mxu0 0
        %2237 = vmatprep.subr.bf16.mxu0 0
        %2238 = vmatpush1.bf16.msra.mxu0 0
        %2239 = vmatprep.subr.bf16.mxu0 0
        %2240 = vmatpush1.bf16.msra.mxu0 0
        %2241 = vmatprep.subr.bf16.mxu0 0
        %2242 = vmatpush1.bf16.msra.mxu0 0
        %2243 = vmatprep.subr.bf16.mxu0 0
        %2244 = vmatpush1.bf16.msra.mxu0 0
        %2245 = vmatprep.subr.bf16.mxu0 0
        %2246 = vmatpush1.bf16.msra.mxu0 0
        %2247 = vmatprep.subr.bf16.mxu0 0
        %2248 = vmatpush1.bf16.msra.mxu0 0
        %2249 = vmatprep.mubr.bf16.mxu0 0
        %2250 = vmatmul.mubr.bf16.gmra.mrb[0].mxu0 %v2215
        %v2251 = vpop.f32.mrb[0].mxu0
        %v2252 = vadd.f32 %v2187, %v2251
        %v2253 = vpop.f32.mrb[0].mxu0
        %v2254 = vpop.f32.mrb[0].mxu0
        %v2255 = vadd.f32 %v2187, %v2254
        %v2256 = vpop.f32.mrb[0].mxu0
        %2257 = vdwg.mxu0
        %v2258 = vadd.f32 %v2005, %v2252
        %v2259 = vadd.f32 %v2006, %v2255
        %2260 = vst.msk [vmem:[%s786] sm:$0xff] %vm824, %v2258
        %2261 = vst.msk [vmem:[%s786 + $0x8] sm:$0xff] %vm824, %v2259
        %s2262 = sand.u32 %s463, 1
        %s2263 = scalar_lea.sflag [#allocation4], %s2262
        %s2264 = sand.u32 %s463, 1
        %s2265 = smul.addr %s2264, 16
        %s2266 = scalar_lea.vmem [#allocation19], %s2265
        %s2267 = sand.u32 %s489, 1
        %s2268 = scalar_lea.sflag [#allocation21], %s2267
        %s2269 = sand.u32 %s489, 1
        %s2270 = smul.addr %s2269, 16
        %s2271 = scalar_lea.vmem [#allocation20], %s2270
        // Predicated region
        $region137: #{tpu_custom_call.1} parent=95 // pred_check
          %p2272 = pneg %p473
        $region138: #{tpu_custom_call.1} parent=95 // pred_check_branch
          %2274 = sbr.rel (%p2272) target = $region140
        $region139: #{tpu_custom_call.1} parent=95 // pred_region
          %s2275 = smul.u32 2, %s46
          %s2277 = ssub.s32 256, 256
          %2278 = vsyncadd %s2263, %s2277
          %s2279 = smul.addr %s2275, 128
          %s2280 = scalar_lea.hbm %s19, %s2279
          %s2281 = sshll.u32 %s2266, 4
          %s2282 = int_to_ptr.vmem [resolvable:$true] %s2281
          %2287 = dma.vmem_to_hbm [thread:$0]  %s2282, 256, %s2280, %s2263, 128, 128, 8
        $region140: #{tpu_custom_call.1} parent=95 // pred_fallthru
          _
        // Predicated region
        $region141: #{tpu_custom_call.1} parent=95 // pred_check
          %p2288 = pneg %p499
        $region142: #{tpu_custom_call.1} parent=95 // pred_check_branch
          %2290 = sbr.rel (%p2288) target = $region144
        $region143: #{tpu_custom_call.1} parent=95 // pred_region
          %s2291 = smul.u32 2, %s46
          %s2293 = ssub.s32 256, 256
          %2294 = vsyncadd %s2268, %s2293
          %s2295 = smul.addr %s2291, 128
          %s2296 = scalar_lea.hbm %s20, %s2295
          %s2297 = sshll.u32 %s2271, 4
          %s2298 = int_to_ptr.vmem [resolvable:$true] %s2297
          %2303 = dma.vmem_to_hbm [thread:$0]  %s2298, 256, %s2296, %s2268, 128, 128, 8
        $region144: #{tpu_custom_call.1} parent=95 // pred_fallthru
          _
      $region96: #{tpu_custom_call.1} parent=5 // pred_fallthru
        _
      %p2304 = scmp.le.s32.totalorder 2, %s41
      // Predicated region
      $region145: #{tpu_custom_call.1} parent=5 // pred_check
        %p2305 = pneg %p2304
      $region146: #{tpu_custom_call.1} parent=5 // pred_check_branch
        %2307 = sbr.rel (%p2305) target = $region148
      $region147: #{tpu_custom_call.1} parent=5 // pred_region
        %s2308 = ssub.s32 %s41, 2
        // Predicated region
        $region149: #{tpu_custom_call.1} parent=147 // pred_check
          %p2309 = pneg %p479
        $region150: #{tpu_custom_call.1} parent=147 // pred_check_branch
          %2311 = sbr.rel (%p2309) target = $region152
        $region151: #{tpu_custom_call.1} parent=147 // pred_region
          %s2312 = sand.u32 %s464, 1
          %s2313 = scalar_lea.sflag [#allocation4], %s2312
          %s2314 = sand.u32 %s464, 1
          %s2315 = smul.addr %s2314, 16
          %s2316 = scalar_lea.vmem [#allocation19], %s2315
          %2317 = dma.done %s2313, 256
        $region152: #{tpu_custom_call.1} parent=147 // pred_fallthru
          _
        // Predicated region
        $region153: #{tpu_custom_call.1} parent=147 // pred_check
          %p2318 = pneg %p505
        $region154: #{tpu_custom_call.1} parent=147 // pred_check_branch
          %2320 = sbr.rel (%p2318) target = $region156
        $region155: #{tpu_custom_call.1} parent=147 // pred_region
          %s2321 = sand.u32 %s490, 1
          %s2322 = scalar_lea.sflag [#allocation21], %s2321
          %s2323 = sand.u32 %s490, 1
          %s2324 = smul.addr %s2323, 16
          %s2325 = scalar_lea.vmem [#allocation20], %s2324
          %2326 = dma.done %s2322, 256
        $region156: #{tpu_custom_call.1} parent=147 // pred_fallthru
          _
      $region148: #{tpu_custom_call.1} parent=5 // pred_fallthru
        _
    $region6: #{tpu_custom_call.1} parent=1 // loop_footer
      %s45 = sadd.s32 1, %s41
    $region7: #{tpu_custom_call.1} parent=1 // loop_footer_branch
      %40 = sbr.rel target = $region3
    $region8: #{tpu_custom_call.1} parent=1 // loop_exit
      _
    %2327 = vsyncpa [#allocation3], 1
    %s2328 = scalar_lea.sflag [#allocation3], 1
    %2329 = vsyncpa %s2328, 1
    %2330 = vsyncpa [#allocation6], 1
    %2331 = vsyncpa [#allocation9], 1
    %2332 = vsyncpa [#allocation12], 1
    %2333 = vsyncpa [#allocation15], 1
    %2334 = vsyncpa [#allocation18], 1
    %2335 = vsyncpa [#allocation4], 1
    %s2336 = scalar_lea.sflag [#allocation4], 1
    %2337 = vsyncpa %s2336, 1
    %2338 = vsyncpa [#allocation21], 1
    %s2339 = scalar_lea.sflag [#allocation21], 1
    %2340 = vsyncpa %s2339, 1

</llo_original>
